<compile_context>
chip_gen: v6e
topology: v6e:2x2x1
jax: 0.10.0
libtpu: 0.0.40
codegen_flags: <defaults>
</compile_context>

<pallas_src>
import functools

import jax
import jax.numpy as jnp
from jax import lax
from jax.experimental import pallas as pl
from jax.experimental.pallas import tpu as pltpu


# ------------------------------ small helpers ------------------------------- #

def _round_up(x, m):
    return -(-x // m) * m


def _pad_minor_to(x, axis, target):
    size = x.shape[axis]
    if size == target:
        return x
    pad_shape = list(x.shape)
    pad_shape[axis] = target - size
    return jnp.concatenate([x, jnp.zeros(pad_shape, x.dtype)], axis=axis)


def _swap_minor(x):
    """Transpose the two minor dims of `x` entirely in VMEM.

    Minor dims are padded to sublane (8) multiples first so the XLU transpose
    only sees aligned tiles; the padding is sliced off afterwards."""
    *lead, a, b = x.shape
    x = _pad_minor_to(x, -2, _round_up(a, 8))
    x = _pad_minor_to(x, -1, _round_up(b, 8))
    perm = tuple(range(len(lead))) + (len(lead) + 1, len(lead))
    return jnp.transpose(x, perm)[..., :b, :a]


def _segment_shift(a, seg_len, *, up):
    """Shift rows by one within each contiguous `seg_len`-row segment.

    up=False: out[j] = a[j-1]  (segment head -> 0)   [conv tap x[2m-1]]
    up=True : out[j] = a[j+1]  (segment tail -> 0)   [deconv tap x[m+1]]

    Implemented as a whole-array rotation followed by a boundary mask, so the
    rotation can use the XLU (pltpu.roll) for vreg-aligned row counts; tiny
    blocks fall back to an equivalent slice+concat rotation (proven lowering)."""
    rows, _ = a.shape
    if rows == 1:
        return jnp.zeros_like(a)
    if rows % 8 == 0 and rows >= 64:
        # XLU rotate (free slot next to MXU/VPU); non-negative shifts only.
        rolled = pltpu.roll(a, (rows - 1) if up else 1, 0)
    else:
        rolled = (jnp.concatenate([a[1:], a[:1]], axis=0) if up
                  else jnp.concatenate([a[-1:], a[:-1]], axis=0))
    j = lax.broadcasted_iota(jnp.int32, (rows, 1), 0)
    boundary = (j % seg_len == seg_len - 1) if up else (j % seg_len == 0)
    return jnp.where(boundary, jnp.zeros_like(rolled), rolled)


# ----------------------------- in-kernel layers ------------------------------ #

def _conv_layer(in_ref, w, b, *, nb, act, mxu_dtype):
    """Conv1d(kernel=3, stride=2, padding=1) on a batch-flat channels-last ref.

    in_ref : (nb*L, C_in)    VMEM scratch ref (needed for strided tap reads)
    w      : (3*C_in, C_out) packed weight value (taps collapsed into K dim)
    b      : (1, C_out)      f32 bias value
    returns: (nb*L//2, C_out) f32 value
    """
    rows_in, _ = in_ref.shape
    rows_out = rows_in // 2
    seg_out = rows_out // nb                          # L_out per batch element
    ev = in_ref[pl.ds(0, rows_out, 2), :]             # x[2m]
    od = in_ref[pl.ds(1, rows_out, 2), :]             # x[2m+1]
    odm1 = _segment_shift(od, seg_out, up=False)      # x[2m-1] (0 at seg head)
    taps = jnp.concatenate([odm1, ev, od], axis=-1)   # (rows_out, 3*C_in)
    acc = jnp.dot(taps.astype(mxu_dtype), w,
                  preferred_element_type=jnp.float32)  # single MXU contraction
    return act(acc + b)


def _deconv_layer(a, w, b, out_ref, *, nb, act, mxu_dtype):
    """ConvTranspose1d(kernel=3, stride=2, padding=1, output_padding=1).

    a      : (nb*L, C_in)      f32 value (batch-flat channels-last)
    w      : (2*C_in, 2*C_out) packed weight value; output lanes = [even | odd]
    b      : (1, 2*C_out)      f32 bias (duplicated for both streams)
    out_ref: (nb*2L, C_out)    VMEM ref, written with even/odd strided stores
    """
    rows, _ = a.shape
    seg = rows // nb
    a_next = _segment_shift(a, seg, up=True)           # x[m+1] (0 at seg tail)
    x2 = jnp.concatenate([a, a_next], axis=-1)         # (rows, 2*C_in)
    y = jnp.dot(x2.astype(mxu_dtype), w,
                preferred_element_type=jnp.float32)    # (rows, 2*C_out)
    y = act(y + b)
    c_out = y.shape[-1] // 2
    out_ref[pl.ds(0, rows, 2), :] = y[:, :c_out].astype(out_ref.dtype)   # out[2m]
    out_ref[pl.ds(1, rows, 2), :] = y[:, c_out:].astype(out_ref.dtype)   # out[2m+1]


def _fused_autoencoder_kernel(x_ref, w_ref, b_ref, out_ref,
                              xcl_s, a1_s, a2_s, d1_s, d2_s, y_s,
                              *, nb, w_layout, b_cols, mxu_dtype,
                              approx_sigmoid):
    relu = lambda v: jnp.maximum(v, 0.0)
    if approx_sigmoid:
        # exp AND the reciprocal go to the EUP slot -> frees the VPU on the
        # full-resolution final layer.
        sigmoid = lambda v: pl.reciprocal(1.0 + jnp.exp(-v), approx=True)
    else:
        sigmoid = lambda v: 1.0 / (1.0 + jnp.exp(-v))  # exact (f32 check path)

    def w_of(i):
        off, rows, cols = w_layout[i]
        return w_ref[off:off + rows, 0:cols]

    def b_of(i):
        return b_ref[i:i + 1, 0:b_cols[i]]

    # ---- NCL block -> batch-flat channels-last, entirely in VMEM ----
    _, c0, l0 = x_ref.shape
    x_nlc = _swap_minor(x_ref[...])                              # (nb, l0, c0)
    xcl_s[...] = x_nlc.reshape(nb * l0, c0).astype(jnp.float32)

    # ---- encoder: 3x [strided taps -> single MXU contraction -> ReLU] ----
    a1_s[...] = _conv_layer(xcl_s, w_of(0), b_of(0), nb=nb, act=relu,
                            mxu_dtype=mxu_dtype)
    a2_s[...] = _conv_layer(a1_s, w_of(1), b_of(1), nb=nb, act=relu,
                            mxu_dtype=mxu_dtype)
    h = _conv_layer(a2_s, w_of(2), b_of(2), nb=nb, act=relu,
                    mxu_dtype=mxu_dtype)

    # ---- decoder: 3x [packed even/odd streams -> single MXU contraction] ----
    # TODO(synk): intermediate deconvs still interleave even/odd rows with
    # stride-2 VMEM stores; keeping the streams contiguous across layers would
    # save store bundles but requires a phase-split rewrite of the tap logic.
    _deconv_layer(h, w_of(3), b_of(3), d1_s, nb=nb, act=relu,
                  mxu_dtype=mxu_dtype)
    _deconv_layer(d1_s[...], w_of(4), b_of(4), d2_s, nb=nb, act=relu,
                  mxu_dtype=mxu_dtype)
    _deconv_layer(d2_s[...], w_of(5), b_of(5), y_s, nb=nb, act=sigmoid,
                  mxu_dtype=mxu_dtype)

    # ---- batch-flat channels-last -> NCL output block (lane-dense on L) ----
    out_ref[...] = _swap_minor(y_s[...].reshape(nb, l0, c0)).astype(out_ref.dtype)


# ----------------------------- parameter packing ----------------------------- #

def _pack_params(params, mxu_dtype):
    """Pack all layer weights into ONE MXU-dtype slab (rows 16-aligned so bf16
    sublane tiles stay aligned) and all biases into ONE f32 slab."""
    def conv_mat(w_oik):                    # (C_out, C_in, 3) -> (3*C_in, C_out)
        c_out, c_in, k = w_oik.shape
        return jnp.transpose(w_oik, (2, 1, 0)).reshape(k * c_in, c_out)

    def deconv_mat(w_iok):                  # (C_in, C_out, 3) -> (2*C_in, 2*C_out)
        c_in, c_out, _ = w_iok.shape
        zeros = jnp.zeros((c_in, c_out), w_iok.dtype)
        # [x[m] | x[m+1]] @ Wp = [ out[2m] | out[2m+1] ]   (pre-activation)
        return jnp.block([[w_iok[:, :, 1], w_iok[:, :, 2]],
                          [zeros,          w_iok[:, :, 0]]])

    mats = [conv_mat(params["enc1_w"]), conv_mat(params["enc2_w"]),
            conv_mat(params["enc3_w"]), deconv_mat(params["dec1_w"]),
            deconv_mat(params["dec2_w"]), deconv_mat(params["dec3_w"])]
    biases = [params["enc1_b"], params["enc2_b"], params["enc3_b"],
              jnp.concatenate([params["dec1_b"]] * 2),
              jnp.concatenate([params["dec2_b"]] * 2),
              jnp.concatenate([params["dec3_b"]] * 2)]

    wmax = max(int(m.shape[1]) for m in mats)
    w_layout, w_rows, off = [], [], 0
    for m in mats:
        r, c = int(m.shape[0]), int(m.shape[1])
        w_layout.append((off, r, c))
        r_pad = _round_up(r, 16)
        w_rows.append(jnp.pad(m, ((0, r_pad - r), (0, wmax - c))))
        off += r_pad
    w_slab = jnp.concatenate(w_rows, axis=0).astype(mxu_dtype)
    b_slab = jnp.stack([jnp.pad(b, (0, wmax - int(b.shape[0]))) for b in biases]
                       ).astype(jnp.float32)
    b_cols = tuple(int(b.shape[0]) for b in biases)
    return w_slab, b_slab, tuple(w_layout), b_cols


# ----------------------- generation-aware tiling helpers --------------------- #

def _default_vmem_limit_bytes():
    """v7x has 64 MiB VMEM per TensorCore; v4/v5e/v6e have 128 MiB."""
    try:
        kind = jax.devices()[0].device_kind.lower()
    except Exception:
        kind = ""
    if "v7" in kind or "7x" in kind:
        return 48 * 1024 * 1024
    if "v2" in kind or "v3" in kind:
        return 12 * 1024 * 1024
    return 100 * 1024 * 1024


def _pick_batch_tile(n, l0, vmem_limit_bytes):
    """Largest batch tile that divides n, keeps >= 2 grid steps when possible
    (so both v7x TensorCores get work via the 'parallel' batch axis) and fits
    the VMEM budget.  The per-row cost model covers the 128-lane-padded f32
    scratch activations (~1.8 KB per full-resolution row) plus headroom for
    the compiler-managed matmul temporaries (taps / x2 / y values)."""
    bytes_per_row = 4096
    budget = max(vmem_limit_bytes - 8 * 1024 * 1024, 2 * 1024 * 1024)
    row_cap = max(budget // bytes_per_row, l0)
    max_nb = n if n == 1 else n // 2
    nb = 1
    for cand in range(1, max_nb + 1):
        if n % cand == 0 and cand * l0 <= row_cap:
            nb = cand
    return nb


# ---------------------------------- forward ---------------------------------- #

def conv_autoencoder_forward(x_ncl, params, *, batch_tile=None,
                             mxu_dtype=jnp.bfloat16, out_dtype=jnp.float32,
                             vmem_limit_bytes=None, approx_sigmoid=True):
    """Forward pass matching the PyTorch ConvAutoencoder (input/output NCL)."""
    n, c0, l0 = x_ncl.shape
    if l0 % 8 != 0:
        raise ValueError("window_size must be divisible by 8")
    vmem_limit = (int(vmem_limit_bytes) if vmem_limit_bytes is not None
                  else _default_vmem_limit_bytes())
    nb = (int(batch_tile) if batch_tile is not None
          else _pick_batch_tile(n, l0, vmem_limit))
    if n % nb != 0:
        raise ValueError("batch_tile must divide the batch size")
    l1, l2 = l0 // 2, l0 // 4

    # Pack parameters once into two VMEM-resident slabs (constant index_maps).
    w_slab, b_slab, w_layout, b_cols = _pack_params(params, mxu_dtype)

    kernel = functools.partial(_fused_autoencoder_kernel, nb=nb,
                               w_layout=w_layout, b_cols=b_cols,
                               mxu_dtype=mxu_dtype,
                               approx_sigmoid=approx_sigmoid)

    out = pl.pallas_call(
        kernel,
        out_shape=jax.ShapeDtypeStruct((n, c0, l0), out_dtype),
        grid=(n // nb,),
        in_specs=[pl.BlockSpec((nb, c0, l0), lambda i: (i, 0, 0)),   # NCL block
                  pl.BlockSpec(w_slab.shape, lambda i: (0, 0)),      # weight slab
                  pl.BlockSpec(b_slab.shape, lambda i: (0, 0))],     # bias slab
        out_specs=pl.BlockSpec((nb, c0, l0), lambda i: (i, 0, 0)),   # NCL block
        scratch_shapes=[
            pltpu.VMEM((nb * l0, c0), jnp.float32),   # input, channels-last
            pltpu.VMEM((nb * l1, 16), jnp.float32),   # enc1 activations
            pltpu.VMEM((nb * l2, 8), jnp.float32),    # enc2 activations
            pltpu.VMEM((nb * l2, 8), jnp.float32),    # dec1 activations
            pltpu.VMEM((nb * l1, 16), jnp.float32),   # dec2 activations
            pltpu.VMEM((nb * l0, c0), jnp.float32),   # dec3 output (pre-transpose)
        ],
        compiler_params=pltpu.CompilerParams(
            dimension_semantics=("parallel",),        # shard batch tiles (v7x)
            vmem_limit_bytes=vmem_limit,
        ),
    )(x_ncl, w_slab, b_slab)
    return out


# ---------------------------- params / reference ----------------------------- #

def init_params(key, num_features):
    def conv_p(k, c_out, c_in, ksz):
        k1, k2 = jax.random.split(k)
        bound = 1.0 / (c_in * ksz) ** 0.5
        w = jax.random.uniform(k1, (c_out, c_in, ksz), jnp.float32, -bound, bound)
        b = jax.random.uniform(k2, (c_out,), jnp.float32, -bound, bound)
        return w, b

    def deconv_p(k, c_in, c_out, ksz):
        k1, k2 = jax.random.split(k)
        bound = 1.0 / (c_out * ksz) ** 0.5
        w = jax.random.uniform(k1, (c_in, c_out, ksz), jnp.float32, -bound, bound)
        b = jax.random.uniform(k2, (c_out,), jnp.float32, -bound, bound)
        return w, b

    ks = jax.random.split(key, 6)
    p = {}
    p["enc1_w"], p["enc1_b"] = conv_p(ks[0], 16, num_features, 3)
    p["enc2_w"], p["enc2_b"] = conv_p(ks[1], 8, 16, 3)
    p["enc3_w"], p["enc3_b"] = conv_p(ks[2], 4, 8, 3)
    p["dec1_w"], p["dec1_b"] = deconv_p(ks[3], 4, 8, 3)
    p["dec2_w"], p["dec2_b"] = deconv_p(ks[4], 8, 16, 3)
    p["dec3_w"], p["dec3_b"] = deconv_p(ks[5], 16, num_features, 3)
    return p


def ref_forward(x_ncl, p):
    """Pure-JAX reference (lax convolutions) matching PyTorch semantics."""
    dn = ("NCH", "OIH", "NCH")

    def conv(x, w, b):
        y = lax.conv_general_dilated(x, w, window_strides=(2,),
                                     padding=[(1, 1)], dimension_numbers=dn)
        return y + b[None, :, None]

    def deconv(x, w, b):
        # ConvTranspose1d(s=2, p=1, op=1, k=3) == lhs-dilated conv with
        # flipped, (C_out, C_in, K)-arranged weights and padding (1, 2).
        w2 = jnp.flip(jnp.transpose(w, (1, 0, 2)), axis=-1)
        y = lax.conv_general_dilated(x, w2, window_strides=(1,),
                                     padding=[(1, 2)], lhs_dilation=(2,),
                                     dimension_numbers=dn)
        return y + b[None, :, None]

    relu = lambda v: jnp.maximum(v, 0.0)
    x = relu(conv(x_ncl, p["enc1_w"], p["enc1_b"]))
    x = relu(conv(x, p["enc2_w"], p["enc2_b"]))
    x = relu(conv(x, p["enc3_w"], p["enc3_b"]))
    x = relu(deconv(x, p["dec1_w"], p["dec1_b"]))
    x = relu(deconv(x, p["dec2_w"], p["dec2_b"]))
    x = jax.nn.sigmoid(deconv(x, p["dec3_w"], p["dec3_b"]))
    return x


# ----------------------------------- main ------------------------------------ #

if __name__ == "__main__":
    batch, num_features, window_size = 2, 4, 16  # window must be divisible by 8
    key = jax.random.PRNGKey(0)
    kx, kp = jax.random.split(key)

    x = jax.random.uniform(kx, (batch, num_features, window_size), jnp.float32)
    params = init_params(kp, num_features)

    # Default: bf16 MXU operands + EUP sigmoid.  Also run an exact-f32 variant
    # of the same fused kernel for a tight correctness check vs the reference.
    fwd = jax.jit(conv_autoencoder_forward)
    fwd_f32 = jax.jit(functools.partial(conv_autoencoder_forward,
                                        mxu_dtype=jnp.float32,
                                        approx_sigmoid=False))

    out = jax.block_until_ready(fwd(x, params))
    out_f32 = jax.block_until_ready(fwd_f32(x, params))

    assert out.shape == (batch, num_features, window_size)
    ref = ref_forward(x, params)
    assert jnp.allclose(out_f32, ref, atol=1e-5, rtol=1e-5), \
        "f32 kernel mismatch vs reference"
    assert jnp.allclose(out, ref, atol=2e-2, rtol=2e-2), \
        "bf16 kernel mismatch vs reference"

    print("KERNEL_OK")
</pallas_src>

<mosaic_0001>
module attributes {stable_mosaic.version = 11 : i64} {
  func.func @_fused_autoencoder_kernel(%arg0: i32, %arg1: memref<1x4x16xf32, #tpu.memory_space<vmem>>, %arg2: memref<160x32xbf16, #tpu.memory_space<vmem>>, %arg3: memref<6x32xf32, #tpu.memory_space<vmem>>, %arg4: memref<1x4x16xf32, #tpu.memory_space<vmem>>, %arg5: memref<16x4xf32, #tpu.memory_space<vmem>>, %arg6: memref<8x16xf32, #tpu.memory_space<vmem>>, %arg7: memref<4x8xf32, #tpu.memory_space<vmem>>, %arg8: memref<4x8xf32, #tpu.memory_space<vmem>>, %arg9: memref<8x16xf32, #tpu.memory_space<vmem>>, %arg10: memref<16x4xf32, #tpu.memory_space<vmem>>) attributes {dimension_semantics = [#tpu.dimension_semantics<parallel>], iteration_bounds = array<i64: 2>, scalar_prefetch = 0 : i64, scratch_operands = 6 : i64, tpu.core_type = #tpu.core_type<tc>, window_params = [{transform_indices = @transform_0, window_bounds = array<i64: 1, 4, 16>}, {pipeline_mode = #tpu.pipeline_mode<synchronous>, transform_indices = @transform_1, window_bounds = array<i64: 160, 32>}, {pipeline_mode = #tpu.pipeline_mode<synchronous>, transform_indices = @transform_2, window_bounds = array<i64: 6, 32>}, {transform_indices = @transform_3, window_bounds = array<i64: 1, 4, 16>}]} {
    %c0 = arith.constant 0 : index
    %c0_0 = arith.constant 0 : index
    %c0_1 = arith.constant 0 : index
    %0 = vector.load %arg1[%c0, %c0_0, %c0_1] : memref<1x4x16xf32, #tpu.memory_space<vmem>>, vector<1x4x16xf32>
    %cst = arith.constant 0.000000e+00 : f32
    %1 = vector.broadcast %cst : f32 to vector<1x4x16xf32>
    %2 = tpu.concatenate %0, %1 in 1 : vector<1x4x16xf32>, vector<1x4x16xf32> -> vector<1x8x16xf32>
    %3 = tpu.transpose %2, [0, 2, 1] : vector<1x8x16xf32> -> vector<1x16x8xf32>
    %4 = vector.extract_strided_slice %3 {offsets = [0, 0, 0], sizes = [1, 16, 4], strides = [1, 1, 1]} : vector<1x16x8xf32> to vector<1x16x4xf32>
    %5 = vector.shape_cast %4 : vector<1x16x4xf32> to vector<16x4xf32>
    %c0_2 = arith.constant 0 : index
    %c0_3 = arith.constant 0 : index
    %6 = vector.load %arg5[%c0_2, %c0_3] : memref<16x4xf32, #tpu.memory_space<vmem>>, vector<16x4xf32>
    tpu.vector_store %arg5[%c0_2, %c0_3], %5 {strides = array<i32>} : memref<16x4xf32, #tpu.memory_space<vmem>>, vector<16x4xf32>,
    %c0_4 = arith.constant 0 : index
    %c0_5 = arith.constant 0 : index
    %7 = vector.load %arg2[%c0_4, %c0_5] : memref<160x32xbf16, #tpu.memory_space<vmem>>, vector<12x16xbf16>
    %c0_6 = arith.constant 0 : index
    %c0_7 = arith.constant 0 : index
    %8 = vector.load %arg3[%c0_6, %c0_7] : memref<6x32xf32, #tpu.memory_space<vmem>>, vector<1x16xf32>
    %c0_8 = arith.constant 0 : index
    %c0_9 = arith.constant 0 : index
    %9 = tpu.strided_load %arg5[%c0_8, %c0_9] {strides = array<i32: 2, 1>} : memref<16x4xf32, #tpu.memory_space<vmem>>, vector<8x4xf32>
    %c1 = arith.constant 1 : index
    %c0_10 = arith.constant 0 : index
    %10 = tpu.strided_load %arg5[%c1, %c0_10] {strides = array<i32: 2, 1>} : memref<16x4xf32, #tpu.memory_space<vmem>>, vector<8x4xf32>
    %11 = vector.extract_strided_slice %10 {offsets = [7, 0], sizes = [1, 4], strides = [1, 1]} : vector<8x4xf32> to vector<1x4xf32>
    %12 = vector.extract_strided_slice %10 {offsets = [0, 0], sizes = [7, 4], strides = [1, 1]} : vector<8x4xf32> to vector<7x4xf32>
    %13 = tpu.concatenate %11, %12 in 0 : vector<1x4xf32>, vector<7x4xf32> -> vector<8x4xf32>
    %14 = tpu.iota {dimensions = array<i32: 0>} : vector<8x1xi32>
    %c8_i32 = arith.constant 8 : i32
    %c0_i32 = arith.constant 0 : i32
    %15 = arith.cmpi eq, %c8_i32, %c0_i32 : i32
    %c1_i32 = arith.constant 1 : i32
    %16 = arith.select %15, %c1_i32, %c8_i32 : i32
    %17 = vector.broadcast %16 : i32 to vector<8x1xi32>
    %18 = arith.remsi %14, %17 : vector<8x1xi32>
    %c0_i32_11 = arith.constant 0 : i32
    %19 = vector.broadcast %c0_i32_11 : i32 to vector<8x1xi32>
    %20 = arith.cmpi ne, %18, %19 : vector<8x1xi32>
    %c0_i32_12 = arith.constant 0 : i32
    %21 = vector.broadcast %c0_i32_12 : i32 to vector<8x1xi32>
    %22 = arith.cmpi slt, %18, %21 : vector<8x1xi32>
    %c0_i32_13 = arith.constant 0 : i32
    %23 = arith.cmpi slt, %16, %c0_i32_13 : i32
    %24 = vector.broadcast %23 : i1 to vector<8x1xi1>
    %25 = vector.broadcast %24 : vector<8x1xi1> to vector<8x1xi1>
    %26 = arith.xori %22, %25 : vector<8x1xi1>
    %27 = arith.andi %26, %20 : vector<8x1xi1>
    %28 = vector.broadcast %16 : i32 to vector<8x1xi32>
    %29 = arith.addi %18, %28 : vector<8x1xi32>
    %30 = arith.select %27, %29, %18 : vector<8x1xi1>, vector<8x1xi32>
    %c0_i32_14 = arith.constant 0 : i32
    %31 = vector.broadcast %c0_i32_14 : i32 to vector<8x1xi32>
    %32 = arith.cmpi eq, %30, %31 : vector<8x1xi32>
    %cst_15 = arith.constant 0.000000e+00 : f32
    %33 = vector.broadcast %cst_15 : f32 to vector<8x4xf32>
    %34 = vector.shape_cast %32 : vector<8x1xi1> to vector<8x1xi1>
    %35 = vector.broadcast %34 : vector<8x1xi1> to vector<8x4xi1>
    %36 = arith.select %35, %33, %13 : vector<8x4xi1>, vector<8x4xf32>
    %37 = tpu.concatenate %36, %9, %10 in 1 : vector<8x4xf32>, vector<8x4xf32>, vector<8x4xf32> -> vector<8x12xf32>
    %38 = arith.truncf %37 : vector<8x12xf32> to vector<8x12xbf16>
    %cst_16 = arith.constant dense<0.000000e+00> : vector<8x16xf32>
    %39 = tpu.matmul %38, %7, %cst_16 {dimension_numbers = #tpu.dot_dimension_numbers<[1], [0], [0], [1], [0, 0, 1, 1], [], []>} : vector<8x12xbf16>, vector<12x16xbf16>, vector<8x16xf32> -> vector<8x16xf32>
    %40 = vector.broadcast %8 : vector<1x16xf32> to vector<8x16xf32>
    %41 = arith.addf %39, %40 : vector<8x16xf32>
    %cst_17 = arith.constant 0.000000e+00 : f32
    %42 = vector.broadcast %cst_17 : f32 to vector<8x16xf32>
    %43 = arith.maximumf %41, %42 : vector<8x16xf32>
    %c0_18 = arith.constant 0 : index
    %c0_19 = arith.constant 0 : index
    %44 = vector.load %arg6[%c0_18, %c0_19] : memref<8x16xf32, #tpu.memory_space<vmem>>, vector<8x16xf32>
    tpu.vector_store %arg6[%c0_18, %c0_19], %43 {strides = array<i32>} : memref<8x16xf32, #tpu.memory_space<vmem>>, vector<8x16xf32>,
    %c16 = arith.constant 16 : index
    %c0_20 = arith.constant 0 : index
    %45 = vector.load %arg2[%c16, %c0_20] : memref<160x32xbf16, #tpu.memory_space<vmem>>, vector<48x8xbf16>
    %c1_21 = arith.constant 1 : index
    %c0_22 = arith.constant 0 : index
    %46 = vector.load %arg3[%c1_21, %c0_22] : memref<6x32xf32, #tpu.memory_space<vmem>>, vector<1x8xf32>
    %c0_23 = arith.constant 0 : index
    %c0_24 = arith.constant 0 : index
    %47 = tpu.strided_load %arg6[%c0_23, %c0_24] {strides = array<i32: 2, 1>} : memref<8x16xf32, #tpu.memory_space<vmem>>, vector<4x16xf32>
    %c1_25 = arith.constant 1 : index
    %c0_26 = arith.constant 0 : index
    %48 = tpu.strided_load %arg6[%c1_25, %c0_26] {strides = array<i32: 2, 1>} : memref<8x16xf32, #tpu.memory_space<vmem>>, vector<4x16xf32>
    %49 = vector.extract_strided_slice %48 {offsets = [3, 0], sizes = [1, 16], strides = [1, 1]} : vector<4x16xf32> to vector<1x16xf32>
    %50 = vector.extract_strided_slice %48 {offsets = [0, 0], sizes = [3, 16], strides = [1, 1]} : vector<4x16xf32> to vector<3x16xf32>
    %51 = tpu.concatenate %49, %50 in 0 : vector<1x16xf32>, vector<3x16xf32> -> vector<4x16xf32>
    %52 = tpu.iota {dimensions = array<i32: 0>} : vector<4x1xi32>
    %c4_i32 = arith.constant 4 : i32
    %c0_i32_27 = arith.constant 0 : i32
    %53 = arith.cmpi eq, %c4_i32, %c0_i32_27 : i32
    %c1_i32_28 = arith.constant 1 : i32
    %54 = arith.select %53, %c1_i32_28, %c4_i32 : i32
    %55 = vector.broadcast %54 : i32 to vector<4x1xi32>
    %56 = arith.remsi %52, %55 : vector<4x1xi32>
    %c0_i32_29 = arith.constant 0 : i32
    %57 = vector.broadcast %c0_i32_29 : i32 to vector<4x1xi32>
    %58 = arith.cmpi ne, %56, %57 : vector<4x1xi32>
    %c0_i32_30 = arith.constant 0 : i32
    %59 = vector.broadcast %c0_i32_30 : i32 to vector<4x1xi32>
    %60 = arith.cmpi slt, %56, %59 : vector<4x1xi32>
    %c0_i32_31 = arith.constant 0 : i32
    %61 = arith.cmpi slt, %54, %c0_i32_31 : i32
    %62 = vector.broadcast %61 : i1 to vector<4x1xi1>
    %63 = vector.broadcast %62 : vector<4x1xi1> to vector<4x1xi1>
    %64 = arith.xori %60, %63 : vector<4x1xi1>
    %65 = arith.andi %64, %58 : vector<4x1xi1>
    %66 = vector.broadcast %54 : i32 to vector<4x1xi32>
    %67 = arith.addi %56, %66 : vector<4x1xi32>
    %68 = arith.select %65, %67, %56 : vector<4x1xi1>, vector<4x1xi32>
    %c0_i32_32 = arith.constant 0 : i32
    %69 = vector.broadcast %c0_i32_32 : i32 to vector<4x1xi32>
    %70 = arith.cmpi eq, %68, %69 : vector<4x1xi32>
    %cst_33 = arith.constant 0.000000e+00 : f32
    %71 = vector.broadcast %cst_33 : f32 to vector<4x16xf32>
    %72 = vector.shape_cast %70 : vector<4x1xi1> to vector<4x1xi1>
    %73 = vector.broadcast %72 : vector<4x1xi1> to vector<4x16xi1>
    %74 = arith.select %73, %71, %51 : vector<4x16xi1>, vector<4x16xf32>
    %75 = tpu.concatenate %74, %47, %48 in 1 : vector<4x16xf32>, vector<4x16xf32>, vector<4x16xf32> -> vector<4x48xf32>
    %76 = arith.truncf %75 : vector<4x48xf32> to vector<4x48xbf16>
    %cst_34 = arith.constant dense<0.000000e+00> : vector<4x8xf32>
    %77 = tpu.matmul %76, %45, %cst_34 {dimension_numbers = #tpu.dot_dimension_numbers<[1], [0], [0], [1], [0, 0, 1, 1], [], []>} : vector<4x48xbf16>, vector<48x8xbf16>, vector<4x8xf32> -> vector<4x8xf32>
    %78 = vector.broadcast %46 : vector<1x8xf32> to vector<4x8xf32>
    %79 = arith.addf %77, %78 : vector<4x8xf32>
    %cst_35 = arith.constant 0.000000e+00 : f32
    %80 = vector.broadcast %cst_35 : f32 to vector<4x8xf32>
    %81 = arith.maximumf %79, %80 : vector<4x8xf32>
    %c0_36 = arith.constant 0 : index
    %c0_37 = arith.constant 0 : index
    %82 = vector.load %arg7[%c0_36, %c0_37] : memref<4x8xf32, #tpu.memory_space<vmem>>, vector<4x8xf32>
    tpu.vector_store %arg7[%c0_36, %c0_37], %81 {strides = array<i32>} : memref<4x8xf32, #tpu.memory_space<vmem>>, vector<4x8xf32>,
    %c64 = arith.constant 64 : index
    %c0_38 = arith.constant 0 : index
    %83 = vector.load %arg2[%c64, %c0_38] : memref<160x32xbf16, #tpu.memory_space<vmem>>, vector<24x4xbf16>
    %c2 = arith.constant 2 : index
    %c0_39 = arith.constant 0 : index
    %84 = vector.load %arg3[%c2, %c0_39] : memref<6x32xf32, #tpu.memory_space<vmem>>, vector<1x4xf32>
    %c0_40 = arith.constant 0 : index
    %c0_41 = arith.constant 0 : index
    %85 = tpu.strided_load %arg7[%c0_40, %c0_41] {strides = array<i32: 2, 1>} : memref<4x8xf32, #tpu.memory_space<vmem>>, vector<2x8xf32>
    %c1_42 = arith.constant 1 : index
    %c0_43 = arith.constant 0 : index
    %86 = tpu.strided_load %arg7[%c1_42, %c0_43] {strides = array<i32: 2, 1>} : memref<4x8xf32, #tpu.memory_space<vmem>>, vector<2x8xf32>
    %87 = vector.extract_strided_slice %86 {offsets = [1, 0], sizes = [1, 8], strides = [1, 1]} : vector<2x8xf32> to vector<1x8xf32>
    %88 = vector.extract_strided_slice %86 {offsets = [0, 0], sizes = [1, 8], strides = [1, 1]} : vector<2x8xf32> to vector<1x8xf32>
    %89 = tpu.concatenate %87, %88 in 0 : vector<1x8xf32>, vector<1x8xf32> -> vector<2x8xf32>
    %90 = tpu.iota {dimensions = array<i32: 0>} : vector<2x1xi32>
    %c2_i32 = arith.constant 2 : i32
    %c0_i32_44 = arith.constant 0 : i32
    %91 = arith.cmpi eq, %c2_i32, %c0_i32_44 : i32
    %c1_i32_45 = arith.constant 1 : i32
    %92 = arith.select %91, %c1_i32_45, %c2_i32 : i32
    %93 = vector.broadcast %92 : i32 to vector<2x1xi32>
    %94 = arith.remsi %90, %93 : vector<2x1xi32>
    %c0_i32_46 = arith.constant 0 : i32
    %95 = vector.broadcast %c0_i32_46 : i32 to vector<2x1xi32>
    %96 = arith.cmpi ne, %94, %95 : vector<2x1xi32>
    %c0_i32_47 = arith.constant 0 : i32
    %97 = vector.broadcast %c0_i32_47 : i32 to vector<2x1xi32>
    %98 = arith.cmpi slt, %94, %97 : vector<2x1xi32>
    %c0_i32_48 = arith.constant 0 : i32
    %99 = arith.cmpi slt, %92, %c0_i32_48 : i32
    %100 = vector.broadcast %99 : i1 to vector<2x1xi1>
    %101 = vector.broadcast %100 : vector<2x1xi1> to vector<2x1xi1>
    %102 = arith.xori %98, %101 : vector<2x1xi1>
    %103 = arith.andi %102, %96 : vector<2x1xi1>
    %104 = vector.broadcast %92 : i32 to vector<2x1xi32>
    %105 = arith.addi %94, %104 : vector<2x1xi32>
    %106 = arith.select %103, %105, %94 : vector<2x1xi1>, vector<2x1xi32>
    %c0_i32_49 = arith.constant 0 : i32
    %107 = vector.broadcast %c0_i32_49 : i32 to vector<2x1xi32>
    %108 = arith.cmpi eq, %106, %107 : vector<2x1xi32>
    %cst_50 = arith.constant 0.000000e+00 : f32
    %109 = vector.broadcast %cst_50 : f32 to vector<2x8xf32>
    %110 = vector.shape_cast %108 : vector<2x1xi1> to vector<2x1xi1>
    %111 = vector.broadcast %110 : vector<2x1xi1> to vector<2x8xi1>
    %112 = arith.select %111, %109, %89 : vector<2x8xi1>, vector<2x8xf32>
    %113 = tpu.concatenate %112, %85, %86 in 1 : vector<2x8xf32>, vector<2x8xf32>, vector<2x8xf32> -> vector<2x24xf32>
    %114 = arith.truncf %113 : vector<2x24xf32> to vector<2x24xbf16>
    %cst_51 = arith.constant dense<0.000000e+00> : vector<2x4xf32>
    %115 = tpu.matmul %114, %83, %cst_51 {dimension_numbers = #tpu.dot_dimension_numbers<[1], [0], [0], [1], [0, 0, 1, 1], [], []>} : vector<2x24xbf16>, vector<24x4xbf16>, vector<2x4xf32> -> vector<2x4xf32>
    %116 = vector.broadcast %84 : vector<1x4xf32> to vector<2x4xf32>
    %117 = arith.addf %115, %116 : vector<2x4xf32>
    %cst_52 = arith.constant 0.000000e+00 : f32
    %118 = vector.broadcast %cst_52 : f32 to vector<2x4xf32>
    %119 = arith.maximumf %117, %118 : vector<2x4xf32>
    %c96 = arith.constant 96 : index
    %c0_53 = arith.constant 0 : index
    %120 = vector.load %arg2[%c96, %c0_53] : memref<160x32xbf16, #tpu.memory_space<vmem>>, vector<8x16xbf16>
    %c3 = arith.constant 3 : index
    %c0_54 = arith.constant 0 : index
    %121 = vector.load %arg3[%c3, %c0_54] : memref<6x32xf32, #tpu.memory_space<vmem>>, vector<1x16xf32>
    %122 = vector.extract_strided_slice %119 {offsets = [1, 0], sizes = [1, 4], strides = [1, 1]} : vector<2x4xf32> to vector<1x4xf32>
    %123 = vector.extract_strided_slice %119 {offsets = [0, 0], sizes = [1, 4], strides = [1, 1]} : vector<2x4xf32> to vector<1x4xf32>
    %124 = tpu.concatenate %122, %123 in 0 : vector<1x4xf32>, vector<1x4xf32> -> vector<2x4xf32>
    %125 = tpu.iota {dimensions = array<i32: 0>} : vector<2x1xi32>
    %c2_i32_55 = arith.constant 2 : i32
    %c0_i32_56 = arith.constant 0 : i32
    %126 = arith.cmpi eq, %c2_i32_55, %c0_i32_56 : i32
    %c1_i32_57 = arith.constant 1 : i32
    %127 = arith.select %126, %c1_i32_57, %c2_i32_55 : i32
    %128 = vector.broadcast %127 : i32 to vector<2x1xi32>
    %129 = arith.remsi %125, %128 : vector<2x1xi32>
    %c0_i32_58 = arith.constant 0 : i32
    %130 = vector.broadcast %c0_i32_58 : i32 to vector<2x1xi32>
    %131 = arith.cmpi ne, %129, %130 : vector<2x1xi32>
    %c0_i32_59 = arith.constant 0 : i32
    %132 = vector.broadcast %c0_i32_59 : i32 to vector<2x1xi32>
    %133 = arith.cmpi slt, %129, %132 : vector<2x1xi32>
    %c0_i32_60 = arith.constant 0 : i32
    %134 = arith.cmpi slt, %127, %c0_i32_60 : i32
    %135 = vector.broadcast %134 : i1 to vector<2x1xi1>
    %136 = vector.broadcast %135 : vector<2x1xi1> to vector<2x1xi1>
    %137 = arith.xori %133, %136 : vector<2x1xi1>
    %138 = arith.andi %137, %131 : vector<2x1xi1>
    %139 = vector.broadcast %127 : i32 to vector<2x1xi32>
    %140 = arith.addi %129, %139 : vector<2x1xi32>
    %141 = arith.select %138, %140, %129 : vector<2x1xi1>, vector<2x1xi32>
    %c1_i32_61 = arith.constant 1 : i32
    %142 = vector.broadcast %c1_i32_61 : i32 to vector<2x1xi32>
    %143 = arith.cmpi eq, %141, %142 : vector<2x1xi32>
    %cst_62 = arith.constant 0.000000e+00 : f32
    %144 = vector.broadcast %cst_62 : f32 to vector<2x4xf32>
    %145 = vector.shape_cast %143 : vector<2x1xi1> to vector<2x1xi1>
    %146 = vector.broadcast %145 : vector<2x1xi1> to vector<2x4xi1>
    %147 = arith.select %146, %144, %124 : vector<2x4xi1>, vector<2x4xf32>
    %148 = tpu.concatenate %119, %147 in 1 : vector<2x4xf32>, vector<2x4xf32> -> vector<2x8xf32>
    %149 = arith.truncf %148 : vector<2x8xf32> to vector<2x8xbf16>
    %cst_63 = arith.constant dense<0.000000e+00> : vector<2x16xf32>
    %150 = tpu.matmul %149, %120, %cst_63 {dimension_numbers = #tpu.dot_dimension_numbers<[1], [0], [0], [1], [0, 0, 1, 1], [], []>} : vector<2x8xbf16>, vector<8x16xbf16>, vector<2x16xf32> -> vector<2x16xf32>
    %151 = vector.broadcast %121 : vector<1x16xf32> to vector<2x16xf32>
    %152 = arith.addf %150, %151 : vector<2x16xf32>
    %cst_64 = arith.constant 0.000000e+00 : f32
    %153 = vector.broadcast %cst_64 : f32 to vector<2x16xf32>
    %154 = arith.maximumf %152, %153 : vector<2x16xf32>
    %155 = vector.extract_strided_slice %154 {offsets = [0, 0], sizes = [2, 8], strides = [1, 1]} : vector<2x16xf32> to vector<2x8xf32>
    %c0_65 = arith.constant 0 : index
    %c0_66 = arith.constant 0 : index
    %156 = tpu.strided_load %arg8[%c0_65, %c0_66] {strides = array<i32: 2, 1>} : memref<4x8xf32, #tpu.memory_space<vmem>>, vector<2x8xf32>
    tpu.strided_store %arg8[%c0_65, %c0_66], %155 {strides = array<i32: 2, 1>} : memref<4x8xf32, #tpu.memory_space<vmem>>, vector<2x8xf32>
    %157 = vector.extract_strided_slice %154 {offsets = [0, 8], sizes = [2, 8], strides = [1, 1]} : vector<2x16xf32> to vector<2x8xf32>
    %c1_67 = arith.constant 1 : index
    %c0_68 = arith.constant 0 : index
    %158 = tpu.strided_load %arg8[%c1_67, %c0_68] {strides = array<i32: 2, 1>} : memref<4x8xf32, #tpu.memory_space<vmem>>, vector<2x8xf32>
    tpu.strided_store %arg8[%c1_67, %c0_68], %157 {strides = array<i32: 2, 1>} : memref<4x8xf32, #tpu.memory_space<vmem>>, vector<2x8xf32>
    %c0_69 = arith.constant 0 : index
    %c0_70 = arith.constant 0 : index
    %159 = vector.load %arg8[%c0_69, %c0_70] : memref<4x8xf32, #tpu.memory_space<vmem>>, vector<4x8xf32>
    %c112 = arith.constant 112 : index
    %c0_71 = arith.constant 0 : index
    %160 = vector.load %arg2[%c112, %c0_71] : memref<160x32xbf16, #tpu.memory_space<vmem>>, vector<16x32xbf16>
    %c4 = arith.constant 4 : index
    %c0_72 = arith.constant 0 : index
    %161 = vector.load %arg3[%c4, %c0_72] : memref<6x32xf32, #tpu.memory_space<vmem>>, vector<1x32xf32>
    %162 = vector.extract_strided_slice %159 {offsets = [1, 0], sizes = [3, 8], strides = [1, 1]} : vector<4x8xf32> to vector<3x8xf32>
    %163 = vector.extract_strided_slice %159 {offsets = [0, 0], sizes = [1, 8], strides = [1, 1]} : vector<4x8xf32> to vector<1x8xf32>
    %164 = tpu.concatenate %162, %163 in 0 : vector<3x8xf32>, vector<1x8xf32> -> vector<4x8xf32>
    %165 = tpu.iota {dimensions = array<i32: 0>} : vector<4x1xi32>
    %c4_i32_73 = arith.constant 4 : i32
    %c0_i32_74 = arith.constant 0 : i32
    %166 = arith.cmpi eq, %c4_i32_73, %c0_i32_74 : i32
    %c1_i32_75 = arith.constant 1 : i32
    %167 = arith.select %166, %c1_i32_75, %c4_i32_73 : i32
    %168 = vector.broadcast %167 : i32 to vector<4x1xi32>
    %169 = arith.remsi %165, %168 : vector<4x1xi32>
    %c0_i32_76 = arith.constant 0 : i32
    %170 = vector.broadcast %c0_i32_76 : i32 to vector<4x1xi32>
    %171 = arith.cmpi ne, %169, %170 : vector<4x1xi32>
    %c0_i32_77 = arith.constant 0 : i32
    %172 = vector.broadcast %c0_i32_77 : i32 to vector<4x1xi32>
    %173 = arith.cmpi slt, %169, %172 : vector<4x1xi32>
    %c0_i32_78 = arith.constant 0 : i32
    %174 = arith.cmpi slt, %167, %c0_i32_78 : i32
    %175 = vector.broadcast %174 : i1 to vector<4x1xi1>
    %176 = vector.broadcast %175 : vector<4x1xi1> to vector<4x1xi1>
    %177 = arith.xori %173, %176 : vector<4x1xi1>
    %178 = arith.andi %177, %171 : vector<4x1xi1>
    %179 = vector.broadcast %167 : i32 to vector<4x1xi32>
    %180 = arith.addi %169, %179 : vector<4x1xi32>
    %181 = arith.select %178, %180, %169 : vector<4x1xi1>, vector<4x1xi32>
    %c3_i32 = arith.constant 3 : i32
    %182 = vector.broadcast %c3_i32 : i32 to vector<4x1xi32>
    %183 = arith.cmpi eq, %181, %182 : vector<4x1xi32>
    %cst_79 = arith.constant 0.000000e+00 : f32
    %184 = vector.broadcast %cst_79 : f32 to vector<4x8xf32>
    %185 = vector.shape_cast %183 : vector<4x1xi1> to vector<4x1xi1>
    %186 = vector.broadcast %185 : vector<4x1xi1> to vector<4x8xi1>
    %187 = arith.select %186, %184, %164 : vector<4x8xi1>, vector<4x8xf32>
    %188 = tpu.concatenate %159, %187 in 1 : vector<4x8xf32>, vector<4x8xf32> -> vector<4x16xf32>
    %189 = arith.truncf %188 : vector<4x16xf32> to vector<4x16xbf16>
    %cst_80 = arith.constant dense<0.000000e+00> : vector<4x32xf32>
    %190 = tpu.matmul %189, %160, %cst_80 {dimension_numbers = #tpu.dot_dimension_numbers<[1], [0], [0], [1], [0, 0, 1, 1], [], []>} : vector<4x16xbf16>, vector<16x32xbf16>, vector<4x32xf32> -> vector<4x32xf32>
    %191 = vector.broadcast %161 : vector<1x32xf32> to vector<4x32xf32>
    %192 = arith.addf %190, %191 : vector<4x32xf32>
    %cst_81 = arith.constant 0.000000e+00 : f32
    %193 = vector.broadcast %cst_81 : f32 to vector<4x32xf32>
    %194 = arith.maximumf %192, %193 : vector<4x32xf32>
    %195 = vector.extract_strided_slice %194 {offsets = [0, 0], sizes = [4, 16], strides = [1, 1]} : vector<4x32xf32> to vector<4x16xf32>
    %c0_82 = arith.constant 0 : index
    %c0_83 = arith.constant 0 : index
    %196 = tpu.strided_load %arg9[%c0_82, %c0_83] {strides = array<i32: 2, 1>} : memref<8x16xf32, #tpu.memory_space<vmem>>, vector<4x16xf32>
    tpu.strided_store %arg9[%c0_82, %c0_83], %195 {strides = array<i32: 2, 1>} : memref<8x16xf32, #tpu.memory_space<vmem>>, vector<4x16xf32>
    %197 = vector.extract_strided_slice %194 {offsets = [0, 16], sizes = [4, 16], strides = [1, 1]} : vector<4x32xf32> to vector<4x16xf32>
    %c1_84 = arith.constant 1 : index
    %c0_85 = arith.constant 0 : index
    %198 = tpu.strided_load %arg9[%c1_84, %c0_85] {strides = array<i32: 2, 1>} : memref<8x16xf32, #tpu.memory_space<vmem>>, vector<4x16xf32>
    tpu.strided_store %arg9[%c1_84, %c0_85], %197 {strides = array<i32: 2, 1>} : memref<8x16xf32, #tpu.memory_space<vmem>>, vector<4x16xf32>
    %c0_86 = arith.constant 0 : index
    %c0_87 = arith.constant 0 : index
    %199 = vector.load %arg9[%c0_86, %c0_87] : memref<8x16xf32, #tpu.memory_space<vmem>>, vector<8x16xf32>
    %c128 = arith.constant 128 : index
    %c0_88 = arith.constant 0 : index
    %200 = vector.load %arg2[%c128, %c0_88] : memref<160x32xbf16, #tpu.memory_space<vmem>>, vector<32x8xbf16>
    %c5 = arith.constant 5 : index
    %c0_89 = arith.constant 0 : index
    %201 = vector.load %arg3[%c5, %c0_89] : memref<6x32xf32, #tpu.memory_space<vmem>>, vector<1x8xf32>
    %202 = vector.extract_strided_slice %199 {offsets = [1, 0], sizes = [7, 16], strides = [1, 1]} : vector<8x16xf32> to vector<7x16xf32>
    %203 = vector.extract_strided_slice %199 {offsets = [0, 0], sizes = [1, 16], strides = [1, 1]} : vector<8x16xf32> to vector<1x16xf32>
    %204 = tpu.concatenate %202, %203 in 0 : vector<7x16xf32>, vector<1x16xf32> -> vector<8x16xf32>
    %205 = tpu.iota {dimensions = array<i32: 0>} : vector<8x1xi32>
    %c8_i32_90 = arith.constant 8 : i32
    %c0_i32_91 = arith.constant 0 : i32
    %206 = arith.cmpi eq, %c8_i32_90, %c0_i32_91 : i32
    %c1_i32_92 = arith.constant 1 : i32
    %207 = arith.select %206, %c1_i32_92, %c8_i32_90 : i32
    %208 = vector.broadcast %207 : i32 to vector<8x1xi32>
    %209 = arith.remsi %205, %208 : vector<8x1xi32>
    %c0_i32_93 = arith.constant 0 : i32
    %210 = vector.broadcast %c0_i32_93 : i32 to vector<8x1xi32>
    %211 = arith.cmpi ne, %209, %210 : vector<8x1xi32>
    %c0_i32_94 = arith.constant 0 : i32
    %212 = vector.broadcast %c0_i32_94 : i32 to vector<8x1xi32>
    %213 = arith.cmpi slt, %209, %212 : vector<8x1xi32>
    %c0_i32_95 = arith.constant 0 : i32
    %214 = arith.cmpi slt, %207, %c0_i32_95 : i32
    %215 = vector.broadcast %214 : i1 to vector<8x1xi1>
    %216 = vector.broadcast %215 : vector<8x1xi1> to vector<8x1xi1>
    %217 = arith.xori %213, %216 : vector<8x1xi1>
    %218 = arith.andi %217, %211 : vector<8x1xi1>
    %219 = vector.broadcast %207 : i32 to vector<8x1xi32>
    %220 = arith.addi %209, %219 : vector<8x1xi32>
    %221 = arith.select %218, %220, %209 : vector<8x1xi1>, vector<8x1xi32>
    %c7_i32 = arith.constant 7 : i32
    %222 = vector.broadcast %c7_i32 : i32 to vector<8x1xi32>
    %223 = arith.cmpi eq, %221, %222 : vector<8x1xi32>
    %cst_96 = arith.constant 0.000000e+00 : f32
    %224 = vector.broadcast %cst_96 : f32 to vector<8x16xf32>
    %225 = vector.shape_cast %223 : vector<8x1xi1> to vector<8x1xi1>
    %226 = vector.broadcast %225 : vector<8x1xi1> to vector<8x16xi1>
    %227 = arith.select %226, %224, %204 : vector<8x16xi1>, vector<8x16xf32>
    %228 = tpu.concatenate %199, %227 in 1 : vector<8x16xf32>, vector<8x16xf32> -> vector<8x32xf32>
    %229 = arith.truncf %228 : vector<8x32xf32> to vector<8x32xbf16>
    %cst_97 = arith.constant dense<0.000000e+00> : vector<8x8xf32>
    %230 = tpu.matmul %229, %200, %cst_97 {dimension_numbers = #tpu.dot_dimension_numbers<[1], [0], [0], [1], [0, 0, 1, 1], [], []>} : vector<8x32xbf16>, vector<32x8xbf16>, vector<8x8xf32> -> vector<8x8xf32>
    %231 = vector.broadcast %201 : vector<1x8xf32> to vector<8x8xf32>
    %232 = arith.addf %230, %231 : vector<8x8xf32>
    %cst_98 = arith.constant 0.000000e+00 : f32
    %233 = vector.broadcast %cst_98 : f32 to vector<8x8xf32>
    %234 = arith.subf %233, %232 : vector<8x8xf32>
    %235 = math.exp %234 : vector<8x8xf32>
    %cst_99 = arith.constant 1.000000e+00 : f32
    %236 = vector.broadcast %cst_99 : f32 to vector<8x8xf32>
    %237 = arith.addf %236, %235 : vector<8x8xf32>
    %238 = tpu.reciprocal %237 {approx = true} : vector<8x8xf32> -> vector<8x8xf32>
    %239 = vector.extract_strided_slice %238 {offsets = [0, 0], sizes = [8, 4], strides = [1, 1]} : vector<8x8xf32> to vector<8x4xf32>
    %c0_100 = arith.constant 0 : index
    %c0_101 = arith.constant 0 : index
    %240 = tpu.strided_load %arg10[%c0_100, %c0_101] {strides = array<i32: 2, 1>} : memref<16x4xf32, #tpu.memory_space<vmem>>, vector<8x4xf32>
    tpu.strided_store %arg10[%c0_100, %c0_101], %239 {strides = array<i32: 2, 1>} : memref<16x4xf32, #tpu.memory_space<vmem>>, vector<8x4xf32>
    %241 = vector.extract_strided_slice %238 {offsets = [0, 4], sizes = [8, 4], strides = [1, 1]} : vector<8x8xf32> to vector<8x4xf32>
    %c1_102 = arith.constant 1 : index
    %c0_103 = arith.constant 0 : index
    %242 = tpu.strided_load %arg10[%c1_102, %c0_103] {strides = array<i32: 2, 1>} : memref<16x4xf32, #tpu.memory_space<vmem>>, vector<8x4xf32>
    tpu.strided_store %arg10[%c1_102, %c0_103], %241 {strides = array<i32: 2, 1>} : memref<16x4xf32, #tpu.memory_space<vmem>>, vector<8x4xf32>
    %c0_104 = arith.constant 0 : index
    %c0_105 = arith.constant 0 : index
    %243 = vector.load %arg10[%c0_104, %c0_105] : memref<16x4xf32, #tpu.memory_space<vmem>>, vector<16x4xf32>
    %244 = vector.shape_cast %243 : vector<16x4xf32> to vector<1x16x4xf32>
    %cst_106 = arith.constant 0.000000e+00 : f32
    %245 = vector.broadcast %cst_106 : f32 to vector<1x16x4xf32>
    %246 = tpu.concatenate %244, %245 in 2 : vector<1x16x4xf32>, vector<1x16x4xf32> -> vector<1x16x8xf32>
    %247 = tpu.transpose %246, [0, 2, 1] : vector<1x16x8xf32> -> vector<1x8x16xf32>
    %248 = vector.extract_strided_slice %247 {offsets = [0, 0, 0], sizes = [1, 4, 16], strides = [1, 1, 1]} : vector<1x8x16xf32> to vector<1x4x16xf32>
    %c0_107 = arith.constant 0 : index
    %c0_108 = arith.constant 0 : index
    %c0_109 = arith.constant 0 : index
    %249 = vector.load %arg4[%c0_107, %c0_108, %c0_109] : memref<1x4x16xf32, #tpu.memory_space<vmem>>, vector<1x4x16xf32>
    tpu.vector_store %arg4[%c0_107, %c0_108, %c0_109], %248 {strides = array<i32>} : memref<1x4x16xf32, #tpu.memory_space<vmem>>, vector<1x4x16xf32>,
    return
  }
  func.func @transform_0(%arg0: i32) -> (i32, i32, i32) {
    %c0_i32 = arith.constant 0 : i32
    %c0_i32_0 = arith.constant 0 : i32
    %c0_i32_1 = arith.constant 0 : i32
    return %arg0, %c0_i32, %c0_i32_0 : i32, i32, i32
  }
  func.func @transform_1(%arg0: i32) -> (i32, i32) {
    %c0_i32 = arith.constant 0 : i32
    %c0_i32_0 = arith.constant 0 : i32
    %c0_i32_1 = arith.constant 0 : i32
    return %c0_i32, %c0_i32_0 : i32, i32
  }
  func.func @transform_2(%arg0: i32) -> (i32, i32) {
    %c0_i32 = arith.constant 0 : i32
    %c0_i32_0 = arith.constant 0 : i32
    %c0_i32_1 = arith.constant 0 : i32
    return %c0_i32, %c0_i32_0 : i32, i32
  }
  func.func @transform_3(%arg0: i32) -> (i32, i32, i32) {
    %c0_i32 = arith.constant 0 : i32
    %c0_i32_0 = arith.constant 0 : i32
    %c0_i32_1 = arith.constant 0 : i32
    return %arg0, %c0_i32, %c0_i32_0 : i32, i32, i32
  }
}

</mosaic_0001>

<llo_original>
// kernel: conv_autoencoder_forward.1
$region0: #{conv_autoencoder_forward.1}
  #allocation0 [shape = 'u32[]', space=smem, size = 0x4, offset = 0x4, fixed_abs, tag = 'smem constant byte address 0x4 - core index']
  #allocation1 [shape = 'u32[144,128]{1,0:T(1,128)}', space=vmem, size = 0x12000, scoped, tag = 'internal scratch']
  #allocation2 [shape = 'f32[16,4]{1,0:T(8,128)}', space=vmem, size = 0x2000, scoped, tag = 'scratch operand']
  #allocation3 [shape = 'f32[8,16]{1,0:T(8,128)}', space=vmem, size = 0x1000, scoped, tag = 'scratch operand']
  #allocation4 [shape = 'f32[4,8]{1,0:T(4,128)}', space=vmem, size = 0x800, scoped, tag = 'scratch operand']
  #allocation5 [shape = 'f32[4,8]{1,0:T(4,128)}', space=vmem, size = 0x800, scoped, tag = 'scratch operand']
  #allocation6 [shape = 'f32[8,16]{1,0:T(8,128)}', space=vmem, size = 0x1000, scoped, tag = 'scratch operand']
  #allocation7 [shape = 'f32[16,4]{1,0:T(8,128)}', space=vmem, size = 0x2000, scoped, tag = 'scratch operand']
  %s0 = inlined_call_operand.vmem [shape: f32[2,4,16], index: 0, kind: input, shape index: {}]
  %s1 = inlined_call_operand.vmem [shape: bf16[160,32], index: 1, kind: input, shape index: {}]
  %s2 = inlined_call_operand.vmem [shape: f32[6,32], index: 2, kind: input, shape index: {}]
  %s3 = inlined_call_operand.hbm [shape: f32[2,4,16], index: 3, kind: output, shape index: {}]
  %s4 = sld [smem:[#allocation0]]
  $region45: #{conv_autoencoder_forward.1} parent=0
    _
  %s6 = ssub.s32 1, %s4
  %s7 = scalar_select 0, %s6, %s4
  $region1: #{conv_autoencoder_forward.1} parent=0
    #allocation8 [shape = 'u8[4096]{0}', space=vmem, size = 0x1000, scoped, tag = 'output window, operand 0']
    #allocation9 [shape = 's32[2]{0}', space=sflag, size = 0x8, scoped, tag = 'scoped memory for conv_autoencoder_forward.1']
    %8 = vsyncpa [#allocation9], 0
    %s9 = scalar_lea.sflag [#allocation9], 1
    %10 = vsyncpa %s9, 0
    loop: start=0, step=1, limit=4
    $region2: #{conv_autoencoder_forward.1} parent=1 // loop_pre_header
      _
    $region3: #{conv_autoencoder_forward.1} parent=1 // loop_header
      %s12 = sphi 0, %s16
      %p13 = scmp.ge.s32.totalorder %s12, 4
      %s22 = sphi 0, %s24
      %s25 = sphi 0, %s22
      %s26 = sphi 0, %s25
      %s42 = sphi 0, %s26
      %s46 = sphi 0, %s46
      %s48 = sphi 0, %s46
      %s49 = sphi 0, %s48
      %s63 = sphi 0, %s49
      %s67 = sphi 0, %s67
      %s69 = sphi 0, %s67
      %s70 = sphi 0, %s69
      %s84 = sphi 0, %s70
      %s90 = sphi 0, %s92
      %s93 = sphi 0, %s90
      %s94 = sphi 0, %s93
      %s110 = sphi 0, %s94
    $region4: #{conv_autoencoder_forward.1} parent=1 // loop_header_branch
      %15 = sbr.rel (%p13) target = $region8
    $region5: #{conv_autoencoder_forward.1} parent=1 // loop_body
      %s17 = ssub.s32 %s12, 1
      %s18 = ssub.s32 %s12, 2
      %s19 = sadd.s32 %s12, 1
      %s20 = ssub.s32 %s12, %s19
      %p21 = scmp.eq.s32.totalorder %s20, 0
      %s23 = sadd.s32 %s22, 1
      %s24 = scalar_select %p21, %s22, %s23
      %p27 = pneg %p21
      %p28 = scmp.eq.s32.totalorder %s12, 1
      %p29 = por %p27, %p28
      %p30 = scmp.ne.s32.totalorder %s22, %s25
      %p31 = scmp.eq.s32.totalorder %s12, 0
      %p32 = por %p30, %p31
      %p33 = scmp.ne.s32.totalorder %s22, %s25
      %p34 = scmp.eq.s32.totalorder %s17, 1
      %p35 = por %p33, %p34
      %p36 = scmp.ne.s32.totalorder %s25, %s26
      %p37 = scmp.eq.s32.totalorder %s17, 0
      %p38 = por %p36, %p37
      %p39 = scmp.ne.s32.totalorder %s25, %s26
      %p40 = scmp.eq.s32.totalorder %s18, 1
      %p41 = por %p39, %p40
      %p43 = scmp.ne.s32.totalorder %s26, %s42
      %p44 = scmp.eq.s32.totalorder %s18, 0
      %p45 = por %p43, %p44
      %s47 = sadd.s32 %s46, 1
      %p50 = scmp.eq.s32.totalorder %s12, 1
      %p51 = scmp.ne.s32.totalorder %s46, %s48
      %p52 = scmp.eq.s32.totalorder %s12, 0
      %p53 = por %p51, %p52
      %p54 = scmp.ne.s32.totalorder %s46, %s48
      %p55 = scmp.eq.s32.totalorder %s17, 1
      %p56 = por %p54, %p55
      %p57 = scmp.ne.s32.totalorder %s48, %s49
      %p58 = scmp.eq.s32.totalorder %s17, 0
      %p59 = por %p57, %p58
      %p60 = scmp.ne.s32.totalorder %s48, %s49
      %p61 = scmp.eq.s32.totalorder %s18, 1
      %p62 = por %p60, %p61
      %p64 = scmp.ne.s32.totalorder %s49, %s63
      %p65 = scmp.eq.s32.totalorder %s18, 0
      %p66 = por %p64, %p65
      %s68 = sadd.s32 %s67, 1
      %p71 = scmp.eq.s32.totalorder %s12, 1
      %p72 = scmp.ne.s32.totalorder %s67, %s69
      %p73 = scmp.eq.s32.totalorder %s12, 0
      %p74 = por %p72, %p73
      %p75 = scmp.ne.s32.totalorder %s67, %s69
      %p76 = scmp.eq.s32.totalorder %s17, 1
      %p77 = por %p75, %p76
      %p78 = scmp.ne.s32.totalorder %s69, %s70
      %p79 = scmp.eq.s32.totalorder %s17, 0
      %p80 = por %p78, %p79
      %p81 = scmp.ne.s32.totalorder %s69, %s70
      %p82 = scmp.eq.s32.totalorder %s18, 1
      %p83 = por %p81, %p82
      %p85 = scmp.ne.s32.totalorder %s70, %s84
      %p86 = scmp.eq.s32.totalorder %s18, 0
      %p87 = por %p85, %p86
      %s88 = ssub.s32 %s12, %s19
      %p89 = scmp.eq.s32.totalorder %s88, 0
      %s91 = sadd.s32 %s90, 1
      %s92 = scalar_select %p89, %s90, %s91
      %p95 = pneg %p89
      %p96 = scmp.eq.s32.totalorder %s12, 1
      %p97 = por %p95, %p96
      %p98 = scmp.ne.s32.totalorder %s90, %s93
      %p99 = scmp.eq.s32.totalorder %s12, 0
      %p100 = por %p98, %p99
      %p101 = scmp.ne.s32.totalorder %s90, %s93
      %p102 = scmp.eq.s32.totalorder %s17, 1
      %p103 = por %p101, %p102
      %p104 = scmp.ne.s32.totalorder %s93, %s94
      %p105 = scmp.eq.s32.totalorder %s17, 0
      %p106 = por %p104, %p105
      %p107 = scmp.ne.s32.totalorder %s93, %s94
      %p108 = scmp.eq.s32.totalorder %s18, 1
      %p109 = por %p107, %p108
      %p111 = scmp.ne.s32.totalorder %s94, %s110
      %p112 = scmp.eq.s32.totalorder %s18, 0
      %p113 = por %p111, %p112
      %p114 = scmp.le.s32.totalorder 1, %s12
      %p115 = scmp.lt.s32.totalorder %s12, 3
      %p116 = pnand %p114, %p115
      %p117 = pneg %p116
      // Predicated region
      $region9: #{conv_autoencoder_forward.1} parent=5 // pred_check
        _
      $region10: #{conv_autoencoder_forward.1} parent=5 // pred_check_branch
        %119 = sbr.rel (%p116) target = $region12
      $region11: #{conv_autoencoder_forward.1} parent=5 // pred_region
        %s120 = ssub.s32 %s12, 1
        // Predicated region
        $region13: #{conv_autoencoder_forward.1} parent=11 // pred_check
          %p121 = pneg %p59
        $region14: #{conv_autoencoder_forward.1} parent=11 // pred_check_branch
          %123 = sbr.rel (%p121) target = $region16
        $region15: #{conv_autoencoder_forward.1} parent=11 // pred_region
          _
        $region16: #{conv_autoencoder_forward.1} parent=11 // pred_fallthru
          _
        // Predicated region
        $region17: #{conv_autoencoder_forward.1} parent=11 // pred_check
          %p124 = pneg %p80
        $region18: #{conv_autoencoder_forward.1} parent=11 // pred_check_branch
          %126 = sbr.rel (%p124) target = $region20
        $region19: #{conv_autoencoder_forward.1} parent=11 // pred_region
          _
        $region20: #{conv_autoencoder_forward.1} parent=11 // pred_fallthru
          _
      $region12: #{conv_autoencoder_forward.1} parent=5 // pred_fallthru
        _
      %p127 = scmp.lt.s32.totalorder %s12, 2
      // Predicated region
      $region21: #{conv_autoencoder_forward.1} parent=5 // pred_check
        %p128 = pneg %p127
      $region22: #{conv_autoencoder_forward.1} parent=5 // pred_check_branch
        %130 = sbr.rel (%p128) target = $region24
      $region23: #{conv_autoencoder_forward.1} parent=5 // pred_region
        // Predicated region
        $region25: #{conv_autoencoder_forward.1} parent=23 // pred_check
          %p131 = pneg %p32
        $region26: #{conv_autoencoder_forward.1} parent=23 // pred_check_branch
          %133 = sbr.rel (%p131) target = $region28
        $region27: #{conv_autoencoder_forward.1} parent=23 // pred_region
          %p134 = scmp.lt.s32.totalorder %s12, 1
          %s135 = scalar_select %p134, %s12, 1
          %s136 = smul.addr %s135, 4
          %s137 = scalar_lea.vmem %s0, %s136
        $region28: #{conv_autoencoder_forward.1} parent=23 // pred_fallthru
          _
      $region24: #{conv_autoencoder_forward.1} parent=5 // pred_fallthru
        _
      %p138 = scmp.le.s32.totalorder 1, %s12
      %p139 = scmp.lt.s32.totalorder %s12, 3
      %p140 = pnand %p138, %p139
      %p141 = pneg %p140
      // Predicated region
      $region29: #{conv_autoencoder_forward.1} parent=5 // pred_check
        _
      $region30: #{conv_autoencoder_forward.1} parent=5 // pred_check_branch
        %143 = sbr.rel (%p140) target = $region32
      $region31: #{conv_autoencoder_forward.1} parent=5 // pred_region
        %s144 = ssub.s32 %s12, 1
        %p145 = scmp.lt.s32.totalorder %s17, 1
        %s146 = scalar_select %p145, %s17, 1
        %s147 = smul.addr %s146, 4
        %s148 = scalar_lea.vmem %s0, %s147
        %p149 = pneg %p38
        %p150 = pneg %p35
        %p151 = pneg %p59
        %p152 = pneg %p56
        %p153 = pneg %p80
        %p154 = pneg %p77
        %p155 = pneg %p106
        %p156 = pneg %p103
        %s157 = sand.u32 %s93, 1
        %s158 = scalar_lea.sflag [#allocation9], %s157
        %s159 = sand.u32 %s93, 1
        %s160 = smul.addr %s159, 4
        %s161 = scalar_lea.vmem [#allocation8], %s160
        %p162 = scmp.lt.s32.totalorder %s17, 1
        %s163 = scalar_select %p162, %s17, 1
        %s164 = smul.addr %s163, 4
        %s165 = scalar_lea.vmem %s0, %s164
        %v167 = vld [vmem:[%s165] sm:$0xf]
        %vm168 = vcmask 1043456
        %v169 = vsel %vm168, %v167, 0.0
        %170 = vxpose.xlu0.b32.start [1/16] %v169, 128
        %171 = vxpose.xlu0.b32.cont [2/16] 0.0, 128
        %172 = vxpose.xlu0.b32.cont [3/16] 0.0, 128
        %173 = vxpose.xlu0.b32.cont [4/16] 0.0, 128
        %174 = vxpose.xlu0.b32.cont [5/16] 0.0, 128
        %175 = vxpose.xlu0.b32.cont [6/16] 0.0, 128
        %176 = vxpose.xlu0.b32.cont [7/16] 0.0, 128
        %177 = vxpose.xlu0.b32.cont [8/16] 0.0, 128
        %178 = vxpose.xlu0.b32.cont [9/16] 0.0, 128
        %179 = vxpose.xlu0.b32.cont [10/16] 0.0, 128
        %180 = vxpose.xlu0.b32.cont [11/16] 0.0, 128
        %181 = vxpose.xlu0.b32.cont [12/16] 0.0, 128
        %182 = vxpose.xlu0.b32.cont [13/16] 0.0, 128
        %183 = vxpose.xlu0.b32.cont [14/16] 0.0, 128
        %184 = vxpose.xlu0.b32.cont [15/16] 0.0, 128
        %185 = vxpose.xlu0.b32.end [16/16] 0.0, 128
        %v186 = vpop.trf.xlu0
        %v187 = vpop.trf.xlu0
        %v188 = vpop.trf.xlu0
        %v189 = vpop.trf.xlu0
        %v190 = vpop.trf.xlu0
        %v191 = vpop.trf.xlu0
        %v192 = vpop.trf.xlu0
        %v193 = vpop.trf.xlu0
        %v194 = vpop.trf.xlu0
        %v195 = vpop.trf.xlu0
        %v196 = vpop.trf.xlu0
        %v197 = vpop.trf.xlu0
        %v198 = vpop.trf.xlu0
        %v199 = vpop.trf.xlu0
        %v200 = vpop.trf.xlu0
        %v201 = vpop.trf.xlu0
        %vm202 = vcmask 31744
        %203 = vst.msk [vmem:[#allocation2] sm:$0xff] %vm202, %v186
        %204 = vst.msk [vmem:[#allocation2 + $0x8] sm:$0xff] %vm202, %v187
        %v205 = vld [vmem:[%s1] sm:$0xf]
        %v206 = vld [vmem:[%s1 + $0x4] sm:$0x3]
        %v207 = vld [vmem:[%s2] sm:$0x1]
        %v208 = vld [vmem:[#allocation2] ss:$2 sm:$0xff]
        %s209 = scalar_lea.vmem [#allocation2], 1
        %v210 = vld [vmem:[%s209] ss:$2 sm:$0xff]
        %v212 = vrot.slane %v210, 7
        %vm214 = vcmask 1040384
        %v215 = vsel %vm214, %v212, %v212
        %v216 = vlaneseq
        %v217 = vshrl.u32 %v216, 7
        %vm218 = vcmp.lt.s32.totalorder %v217, 0
        %v219 = vsub.s32 0, %v217
        %v220 = vsel %vm218, %v219, %v217
        %v221 = vshrl.u32 %v220, 3
        %v222 = vand.u32 %v220, 7
        %v223 = vsub.s32 0, %v222
        %v224 = vsel %vm218, %v223, %v222
        %vm225 = vcmp.ne.s32.totalorder %v224, 0
        %vm226 = vcmp.lt.s32.totalorder %v224, 0
        %vm227 = vmand %vm226, %vm225
        %v228 = vadd.s32 %v224, 8
        %v229 = vsel %vm227, %v228, %v224
        %vm230 = vcmp.eq.s32.totalorder %v229, 0
        %v231 = vsel %vm230, 1, 0
        %vm232 = vcmp.eq.s32.totalorder %v231, 1
        %v233 = vsel %vm232, 0.0, %v215
        %235 = vrot.lane.b32.xlu0 %v208, 4
        %v236 = vpop.permute.xlu0 %235
        %238 = vrot.lane.b32.xlu0 %v210, 8
        %v239 = vpop.permute.xlu0 %238
        %v241 = vsel %vm202, %v233, %v236
        %vm242 = vcmask 64512
        %v243 = vsel %vm242, %v241, %v239
        %v244 = vpack.c.bf16 %v243, %v243
        %v245 = vlaneseq
        %v246 = vshrl.u32 %v245, 7
        %v247 = vsub.s32 0, %v246
        %v248 = vrot.slane %v207, %v247
        %v251 = vunpack.c.l.b16 %v205
        %v252 = vunpack.c.l.b16 %v206
        %v253 = vpack.c.b16 %v252, %v251
        %vm254 = vcmask 97280
        %v256 = vsel %vm254, %v244, 0
        %vm258 = vcmask 1045504
        %v260 = vsel %vm258, %v253, 0
        %262 = vmatprep.subr.bf16.mxu0 0
        %263 = vmatpush1.bf16.msra.mxu0 0
        %264 = vmatprep.subr.bf16.mxu0 0
        %265 = vmatpush1.bf16.msra.mxu0 0
        %266 = vmatprep.subr.bf16.mxu0 0
        %267 = vmatpush1.bf16.msra.mxu0 0
        %268 = vmatprep.subr.bf16.mxu0 0
        %269 = vmatpush1.bf16.msra.mxu0 0
        %270 = vmatprep.subr.bf16.mxu0 0
        %271 = vmatpush1.bf16.msra.mxu0 0
        %272 = vmatprep.subr.bf16.mxu0 0
        %273 = vmatpush1.bf16.msra.mxu0 0
        %274 = vmatprep.subr.bf16.mxu0 0
        %275 = vmatpush1.bf16.msra.mxu0 0
        %276 = vmatprep.subr.bf16.mxu0 0
        %277 = vmatpush1.bf16.msra.mxu0 %v260
        %278 = vmatprep.subr.bf16.mxu0 0
        %279 = vmatpush2.bf16.msra.mxu0 0
        %280 = vmatprep.subr.bf16.mxu0 0
        %281 = vmatpush2.bf16.msra.mxu0 0
        %282 = vmatprep.subr.bf16.mxu0 0
        %283 = vmatpush2.bf16.msra.mxu0 0
        %284 = vmatprep.subr.bf16.mxu0 0
        %285 = vmatpush2.bf16.msra.mxu0 0
        %286 = vmatprep.subr.bf16.mxu0 0
        %287 = vmatpush2.bf16.msra.mxu0 0
        %288 = vmatprep.subr.bf16.mxu0 0
        %289 = vmatpush2.bf16.msra.mxu0 0
        %290 = vmatprep.subr.bf16.mxu0 0
        %291 = vmatpush2.bf16.msra.mxu0 0
        %292 = vmatprep.subr.bf16.mxu0 0
        %293 = vmatpush2.bf16.msra.mxu0 0
        %294 = vmatprep.mubr.bf16.mxu0 0
        %295 = vmatmul.mubr.bf16.gmra.mxu0 %v256
        %v296 = vpop.f32.mrf.mxu0
        %v297 = vadd.f32 %v248, %v296
        %v298 = vpop.f32.mrf.mxu0
        %v299 = vpop.f32.mrf.mxu0
        %v300 = vpop.f32.mrf.mxu0
        %301 = vdwg.mxu0
        %v302 = vmax.f32 %v297, 0.0
        %vm303 = vcmask 130048
        %304 = vst.msk [vmem:[#allocation3] sm:$0xff] %vm303, %v302
        %v305 = vld [vmem:[%s1 + $0x8] sm:$0xf]
        %v306 = vld [vmem:[%s1 + $0xc] sm:$0xf]
        %v307 = vld [vmem:[%s1 + $0x10] sm:$0xf]
        %v308 = vld [vmem:[%s1 + $0x14] sm:$0xf]
        %v309 = vld [vmem:[%s1 + $0x18] sm:$0xf]
        %v310 = vld [vmem:[%s1 + $0x1c] sm:$0xf]
        %v311 = vld [vmem:[%s2 + $0x1] sm:$0x1]
        %v312 = vld [vmem:[#allocation3] ss:$2 sm:$0xf]
        %s313 = scalar_lea.vmem [#allocation3], 1
        %v314 = vld [vmem:[%s313] ss:$2 sm:$0xf]
        %v316 = vrot.slane %v314, 3
        %v318 = vrot.slane %v314, 7
        %v320 = vsel %vm214, %v316, %v318
        %vm321 = vcmp.lt.s32.totalorder %v217, 0
        %v322 = vsub.s32 0, %v217
        %v323 = vsel %vm321, %v322, %v217
        %v324 = vshrl.u32 %v323, 2
        %v325 = vand.u32 %v323, 3
        %v326 = vsub.s32 0, %v325
        %v327 = vsel %vm321, %v326, %v325
        %vm328 = vcmp.ne.s32.totalorder %v327, 0
        %vm329 = vcmp.lt.s32.totalorder %v327, 0
        %vm330 = vmand %vm329, %vm328
        %v331 = vadd.s32 %v327, 4
        %v332 = vsel %vm330, %v331, %v327
        %vm333 = vcmp.eq.s32.totalorder %v332, 0
        %v334 = vsel %vm333, 1, 0
        %vm335 = vcmp.eq.s32.totalorder %v334, 1
        %v336 = vsel %vm335, 0.0, %v320
        %338 = vrot.lane.b32.xlu0 %v312, 16
        %v339 = vpop.permute.xlu0 %338
        %341 = vrot.lane.b32.xlu0 %v314, 32
        %v342 = vpop.permute.xlu0 %341
        %v344 = vsel %vm303, %v336, %v339
        %vm345 = vcmask 261120
        %v346 = vsel %vm345, %v344, %v342
        %v347 = vpack.c.bf16 %v346, %v346
        %v348 = vlaneseq
        %v349 = vshrl.u32 %v348, 7
        %v350 = vsub.s32 0, %v349
        %v351 = vrot.slane %v311, %v350
        %v358 = vunpack.c.l.b16 %v305
        %v359 = vunpack.c.l.b16 %v306
        %v360 = vunpack.c.l.b16 %v307
        %v361 = vunpack.c.l.b16 %v308
        %v362 = vunpack.c.l.b16 %v309
        %v363 = vunpack.c.l.b16 %v310
        %v364 = vpack.c.b16 %v359, %v358
        %v365 = vpack.c.b16 %v361, %v360
        %v366 = vpack.c.b16 %v363, %v362
        %vm370 = vcmask 392192
        %v372 = vsel %vm370, %v347, 0
        %374 = vmatprep.subr.bf16.mxu0 0
        %375 = vmatpush1.bf16.msra.mxu0 0
        %376 = vmatprep.subr.bf16.mxu0 0
        %377 = vmatpush1.bf16.msra.mxu0 0
        %378 = vmatprep.subr.bf16.mxu0 0
        %379 = vmatpush1.bf16.msra.mxu0 0
        %380 = vmatprep.subr.bf16.mxu0 0
        %381 = vmatpush1.bf16.msra.mxu0 0
        %382 = vmatprep.subr.bf16.mxu0 0
        %383 = vmatpush1.bf16.msra.mxu0 0
        %384 = vmatprep.subr.bf16.mxu0 0
        %385 = vmatpush1.bf16.msra.mxu0 %v366
        %386 = vmatprep.subr.bf16.mxu0 0
        %387 = vmatpush1.bf16.msra.mxu0 %v365
        %388 = vmatprep.subr.bf16.mxu0 0
        %389 = vmatpush1.bf16.msra.mxu0 %v364
        %390 = vmatprep.subr.bf16.mxu0 0
        %391 = vmatpush2.bf16.msra.mxu0 0
        %392 = vmatprep.subr.bf16.mxu0 0
        %393 = vmatpush2.bf16.msra.mxu0 0
        %394 = vmatprep.subr.bf16.mxu0 0
        %395 = vmatpush2.bf16.msra.mxu0 0
        %396 = vmatprep.subr.bf16.mxu0 0
        %397 = vmatpush2.bf16.msra.mxu0 0
        %398 = vmatprep.subr.bf16.mxu0 0
        %399 = vmatpush2.bf16.msra.mxu0 0
        %400 = vmatprep.subr.bf16.mxu0 0
        %401 = vmatpush2.bf16.msra.mxu0 0
        %402 = vmatprep.subr.bf16.mxu0 0
        %403 = vmatpush2.bf16.msra.mxu0 0
        %404 = vmatprep.subr.bf16.mxu0 0
        %405 = vmatpush2.bf16.msra.mxu0 0
        %406 = vmatprep.mubr.bf16.mxu0 0
        %407 = vmatmul.mubr.bf16.gmra.mxu0 %v372
        %v408 = vpop.f32.mrf.mxu0
        %v409 = vadd.f32 %v351, %v408
        %v410 = vpop.f32.mrf.mxu0
        %v411 = vpop.f32.mrf.mxu0
        %v412 = vpop.f32.mrf.mxu0
        %413 = vdwg.mxu0
        %v414 = vmax.f32 %v409, 0.0
        %vm415 = vcmask 60416
        %416 = vst.msk [vmem:[#allocation4] sm:$0xf] %vm415, %v414
        %v417 = vld [vmem:[%s1 + $0x20] sm:$0xf]
        %v418 = vld [vmem:[%s1 + $0x24] sm:$0xf]
        %v419 = vld [vmem:[%s1 + $0x28] sm:$0xf]
        %v420 = vld [vmem:[%s2 + $0x2] sm:$0x1]
        %v421 = vld [vmem:[#allocation4] ss:$2 sm:$0x3]
        %s422 = scalar_lea.vmem [#allocation4], 1
        %v423 = vld [vmem:[%s422] ss:$2 sm:$0x3]
        %v425 = vrot.slane %v423, 1
        %v427 = vrot.slane %v423, 7
        %v429 = vsel %vm214, %v425, %v427
        %vm430 = vcmp.lt.s32.totalorder %v217, 0
        %v431 = vsub.s32 0, %v217
        %v432 = vsel %vm430, %v431, %v217
        %v433 = vshrl.u32 %v432, 1
        %v434 = vand.u32 %v432, 1
        %v435 = vsub.s32 0, %v434
        %v436 = vsel %vm430, %v435, %v434
        %vm437 = vcmp.ne.s32.totalorder %v436, 0
        %vm438 = vcmp.lt.s32.totalorder %v436, 0
        %vm439 = vmand %vm438, %vm437
        %v440 = vadd.s32 %v436, 2
        %v441 = vsel %vm439, %v440, %v436
        %vm442 = vcmp.eq.s32.totalorder %v441, 0
        %v443 = vsel %vm442, 1, 0
        %vm444 = vcmp.eq.s32.totalorder %v443, 1
        %v445 = vsel %vm444, 0.0, %v429
        %447 = vrot.lane.b32.xlu0 %v421, 8
        %v448 = vpop.permute.xlu0 %447
        %450 = vrot.lane.b32.xlu0 %v423, 16
        %v451 = vpop.permute.xlu0 %450
        %v453 = vsel %vm242, %v445, %v448
        %v454 = vsel %vm303, %v453, %v451
        %v455 = vpack.c.bf16 %v454, %v454
        %v456 = vlaneseq
        %v457 = vshrl.u32 %v456, 7
        %v458 = vsub.s32 0, %v457
        %v459 = vrot.slane %v420, %v458
        %v463 = vunpack.c.l.b16 %v417
        %v464 = vunpack.c.l.b16 %v418
        %v465 = vunpack.c.l.b16 %v419
        %v466 = vpack.c.b16 %v464, %v463
        %v467 = vpack.c.b16 %v465, %v465
        %vm469 = vcmask 195584
        %v471 = vsel %vm469, %v455, 0
        %v474 = vsel %vm168, %v467, 0
        %476 = vmatprep.subr.bf16.mxu0 0
        %477 = vmatpush1.bf16.msra.mxu0 0
        %478 = vmatprep.subr.bf16.mxu0 0
        %479 = vmatpush1.bf16.msra.mxu0 0
        %480 = vmatprep.subr.bf16.mxu0 0
        %481 = vmatpush1.bf16.msra.mxu0 0
        %482 = vmatprep.subr.bf16.mxu0 0
        %483 = vmatpush1.bf16.msra.mxu0 0
        %484 = vmatprep.subr.bf16.mxu0 0
        %485 = vmatpush1.bf16.msra.mxu0 0
        %486 = vmatprep.subr.bf16.mxu0 0
        %487 = vmatpush1.bf16.msra.mxu0 0
        %488 = vmatprep.subr.bf16.mxu0 0
        %489 = vmatpush1.bf16.msra.mxu0 %v474
        %490 = vmatprep.subr.bf16.mxu0 0
        %491 = vmatpush1.bf16.msra.mxu0 %v466
        %492 = vmatprep.subr.bf16.mxu0 0
        %493 = vmatpush2.bf16.msra.mxu0 0
        %494 = vmatprep.subr.bf16.mxu0 0
        %495 = vmatpush2.bf16.msra.mxu0 0
        %496 = vmatprep.subr.bf16.mxu0 0
        %497 = vmatpush2.bf16.msra.mxu0 0
        %498 = vmatprep.subr.bf16.mxu0 0
        %499 = vmatpush2.bf16.msra.mxu0 0
        %500 = vmatprep.subr.bf16.mxu0 0
        %501 = vmatpush2.bf16.msra.mxu0 0
        %502 = vmatprep.subr.bf16.mxu0 0
        %503 = vmatpush2.bf16.msra.mxu0 0
        %504 = vmatprep.subr.bf16.mxu0 0
        %505 = vmatpush2.bf16.msra.mxu0 0
        %506 = vmatprep.subr.bf16.mxu0 0
        %507 = vmatpush2.bf16.msra.mxu0 0
        %508 = vmatprep.mubr.bf16.mxu0 0
        %509 = vmatmul.mubr.bf16.gmra.mxu0 %v471
        %v510 = vpop.f32.mrf.mxu0
        %v511 = vadd.f32 %v459, %v510
        %v512 = vpop.f32.mrf.mxu0
        %v513 = vpop.f32.mrf.mxu0
        %v514 = vpop.f32.mrf.mxu0
        %515 = vdwg.mxu0
        %v516 = vmax.f32 %v511, 0.0
        %v517 = vld [vmem:[%s1 + $0x30] sm:$0xf]
        %v518 = vld [vmem:[%s2 + $0x3] sm:$0x1]
        %v520 = vrot.slane %v516, 1
        %v522 = vrot.slane %v516, 7
        %v524 = vsel %vm214, %v520, %v522
        %vm525 = vcmp.eq.s32.totalorder %v441, 1
        %v526 = vsel %vm525, 1, 0
        %vm527 = vcmp.eq.s32.totalorder %v526, 1
        %v528 = vsel %vm527, 0.0, %v524
        %530 = vrot.lane.b32.xlu0 %v528, 4
        %v531 = vpop.permute.xlu0 %530
        %v533 = vsel %vm202, %v516, %v531
        %v534 = vpack.c.bf16 %v533, %v533
        %v535 = vlaneseq
        %v536 = vshrl.u32 %v535, 7
        %v537 = vsub.s32 0, %v536
        %v538 = vrot.slane %v518, %v537
        %v540 = vsel %vm242, %v534, 0
        %v543 = vsel %vm168, %v517, 0
        %545 = vmatprep.subr.bf16.mxu0 0
        %546 = vmatpush1.bf16.msra.mxu0 0
        %547 = vmatprep.subr.bf16.mxu0 0
        %548 = vmatpush1.bf16.msra.mxu0 0
        %549 = vmatprep.subr.bf16.mxu0 0
        %550 = vmatpush1.bf16.msra.mxu0 0
        %551 = vmatprep.subr.bf16.mxu0 0
        %552 = vmatpush1.bf16.msra.mxu0 0
        %553 = vmatprep.subr.bf16.mxu0 0
        %554 = vmatpush1.bf16.msra.mxu0 0
        %555 = vmatprep.subr.bf16.mxu0 0
        %556 = vmatpush1.bf16.msra.mxu0 0
        %557 = vmatprep.subr.bf16.mxu0 0
        %558 = vmatpush1.bf16.msra.mxu0 0
        %559 = vmatprep.subr.bf16.mxu0 0
        %560 = vmatpush1.bf16.msra.mxu0 %v543
        %561 = vmatprep.subr.bf16.mxu0 0
        %562 = vmatpush2.bf16.msra.mxu0 0
        %563 = vmatprep.subr.bf16.mxu0 0
        %564 = vmatpush2.bf16.msra.mxu0 0
        %565 = vmatprep.subr.bf16.mxu0 0
        %566 = vmatpush2.bf16.msra.mxu0 0
        %567 = vmatprep.subr.bf16.mxu0 0
        %568 = vmatpush2.bf16.msra.mxu0 0
        %569 = vmatprep.subr.bf16.mxu0 0
        %570 = vmatpush2.bf16.msra.mxu0 0
        %571 = vmatprep.subr.bf16.mxu0 0
        %572 = vmatpush2.bf16.msra.mxu0 0
        %573 = vmatprep.subr.bf16.mxu0 0
        %574 = vmatpush2.bf16.msra.mxu0 0
        %575 = vmatprep.subr.bf16.mxu0 0
        %576 = vmatpush2.bf16.msra.mxu0 0
        %577 = vmatprep.mubr.bf16.mxu0 0
        %578 = vmatmul.mubr.bf16.gmra.mxu0 %v540
        %v579 = vpop.f32.mrf.mxu0
        %v580 = vadd.f32 %v538, %v579
        %v581 = vpop.f32.mrf.mxu0
        %v582 = vpop.f32.mrf.mxu0
        %v583 = vpop.f32.mrf.mxu0
        %584 = vdwg.mxu0
        %v585 = vmax.f32 %v580, 0.0
        %586 = vst [vmem:[#allocation5] ss:$2 sm:$0x3] %v585
        %588 = vrot.lane.b32.xlu0 %v585, 120
        %v589 = vpop.permute.xlu0 %588
        %s591 = scalar_lea.vmem [#allocation5], 1
        %592 = vst [vmem:[%s591] ss:$2 sm:$0x3] %v589
        %v593 = vld [vmem:[#allocation5] sm:$0xf]
        %v594 = vld [vmem:[%s1 + $0x38] sm:$0xf]
        %v595 = vld [vmem:[%s1 + $0x3c] sm:$0xf]
        %v596 = vld [vmem:[%s2 + $0x4] sm:$0x1]
        %v598 = vrot.slane %v593, 1
        %v600 = vrot.slane %v593, 5
        %vm602 = vcmask 1042432
        %v603 = vsel %vm602, %v598, %v600
        %vm604 = vcmp.eq.s32.totalorder %v332, 3
        %v605 = vsel %vm604, 1, 0
        %vm606 = vcmp.eq.s32.totalorder %v605, 1
        %v607 = vsel %vm606, 0.0, %v603
        %609 = vrot.lane.b32.xlu0 %v607, 8
        %v610 = vpop.permute.xlu0 %609
        %v612 = vsel %vm242, %v593, %v610
        %v613 = vpack.c.bf16 %v612, %v612
        %v614 = vlaneseq
        %v615 = vshrl.u32 %v614, 7
        %v616 = vsub.s32 0, %v615
        %v617 = vrot.slane %v596, %v616
        %v620 = vunpack.c.l.b16 %v594
        %v621 = vunpack.c.l.b16 %v595
        %v622 = vpack.c.b16 %v621, %v620
        %v625 = vsel %vm303, %v613, 0
        %627 = vmatprep.subr.bf16.mxu0 0
        %628 = vmatpush1.bf16.msra.mxu0 0
        %629 = vmatprep.subr.bf16.mxu0 0
        %630 = vmatpush1.bf16.msra.mxu0 0
        %631 = vmatprep.subr.bf16.mxu0 0
        %632 = vmatpush1.bf16.msra.mxu0 0
        %633 = vmatprep.subr.bf16.mxu0 0
        %634 = vmatpush1.bf16.msra.mxu0 0
        %635 = vmatprep.subr.bf16.mxu0 0
        %636 = vmatpush1.bf16.msra.mxu0 0
        %637 = vmatprep.subr.bf16.mxu0 0
        %638 = vmatpush1.bf16.msra.mxu0 0
        %639 = vmatprep.subr.bf16.mxu0 0
        %640 = vmatpush1.bf16.msra.mxu0 0
        %641 = vmatprep.subr.bf16.mxu0 0
        %642 = vmatpush1.bf16.msra.mxu0 %v622
        %643 = vmatprep.subr.bf16.mxu0 0
        %644 = vmatpush2.bf16.msra.mxu0 0
        %645 = vmatprep.subr.bf16.mxu0 0
        %646 = vmatpush2.bf16.msra.mxu0 0
        %647 = vmatprep.subr.bf16.mxu0 0
        %648 = vmatpush2.bf16.msra.mxu0 0
        %649 = vmatprep.subr.bf16.mxu0 0
        %650 = vmatpush2.bf16.msra.mxu0 0
        %651 = vmatprep.subr.bf16.mxu0 0
        %652 = vmatpush2.bf16.msra.mxu0 0
        %653 = vmatprep.subr.bf16.mxu0 0
        %654 = vmatpush2.bf16.msra.mxu0 0
        %655 = vmatprep.subr.bf16.mxu0 0
        %656 = vmatpush2.bf16.msra.mxu0 0
        %657 = vmatprep.subr.bf16.mxu0 0
        %658 = vmatpush2.bf16.msra.mxu0 0
        %659 = vmatprep.mubr.bf16.mxu0 0
        %660 = vmatmul.mubr.bf16.gmra.mxu0 %v625
        %v661 = vpop.f32.mrf.mxu0
        %v662 = vadd.f32 %v617, %v661
        %v663 = vpop.f32.mrf.mxu0
        %v664 = vpop.f32.mrf.mxu0
        %v665 = vpop.f32.mrf.mxu0
        %666 = vdwg.mxu0
        %v667 = vmax.f32 %v662, 0.0
        %668 = vst [vmem:[#allocation6] ss:$2 sm:$0xf] %v667
        %670 = vrot.lane.b32.xlu0 %v667, 112
        %v671 = vpop.permute.xlu0 %670
        %s673 = scalar_lea.vmem [#allocation6], 1
        %674 = vst [vmem:[%s673] ss:$2 sm:$0xf] %v671
        %v675 = vld [vmem:[#allocation6] sm:$0xff]
        %v676 = vld [vmem:[%s1 + $0x40] sm:$0xf]
        %v677 = vld [vmem:[%s1 + $0x44] sm:$0xf]
        %v678 = vld [vmem:[%s1 + $0x48] sm:$0xf]
        %v679 = vld [vmem:[%s1 + $0x4c] sm:$0xf]
        %v680 = vld [vmem:[%s2 + $0x5] sm:$0x1]
        %v682 = vrot.slane %v675, 1
        %vm684 = vcmask 1046528
        %v685 = vsel %vm684, %v682, %v682
        %vm686 = vcmp.eq.s32.totalorder %v229, 7
        %v687 = vsel %vm686, 1, 0
        %vm688 = vcmp.eq.s32.totalorder %v687, 1
        %v689 = vsel %vm688, 0.0, %v685
        %691 = vrot.lane.b32.xlu0 %v689, 16
        %v692 = vpop.permute.xlu0 %691
        %v694 = vsel %vm303, %v675, %v692
        %v695 = vpack.c.bf16 %v694, %v694
        %v696 = vlaneseq
        %v697 = vshrl.u32 %v696, 7
        %v698 = vsub.s32 0, %v697
        %v699 = vrot.slane %v680, %v698
        %v704 = vunpack.c.l.b16 %v676
        %v705 = vunpack.c.l.b16 %v677
        %v706 = vunpack.c.l.b16 %v678
        %v707 = vunpack.c.l.b16 %v679
        %v708 = vpack.c.b16 %v705, %v704
        %v709 = vpack.c.b16 %v707, %v706
        %v713 = vsel %vm345, %v695, 0
        %715 = vmatprep.subr.bf16.mxu0 0
        %716 = vmatpush1.bf16.msra.mxu0 0
        %717 = vmatprep.subr.bf16.mxu0 0
        %718 = vmatpush1.bf16.msra.mxu0 0
        %719 = vmatprep.subr.bf16.mxu0 0
        %720 = vmatpush1.bf16.msra.mxu0 0
        %721 = vmatprep.subr.bf16.mxu0 0
        %722 = vmatpush1.bf16.msra.mxu0 0
        %723 = vmatprep.subr.bf16.mxu0 0
        %724 = vmatpush1.bf16.msra.mxu0 0
        %725 = vmatprep.subr.bf16.mxu0 0
        %726 = vmatpush1.bf16.msra.mxu0 0
        %727 = vmatprep.subr.bf16.mxu0 0
        %728 = vmatpush1.bf16.msra.mxu0 %v709
        %729 = vmatprep.subr.bf16.mxu0 0
        %730 = vmatpush1.bf16.msra.mxu0 %v708
        %731 = vmatprep.subr.bf16.mxu0 0
        %732 = vmatpush2.bf16.msra.mxu0 0
        %733 = vmatprep.subr.bf16.mxu0 0
        %734 = vmatpush2.bf16.msra.mxu0 0
        %735 = vmatprep.subr.bf16.mxu0 0
        %736 = vmatpush2.bf16.msra.mxu0 0
        %737 = vmatprep.subr.bf16.mxu0 0
        %738 = vmatpush2.bf16.msra.mxu0 0
        %739 = vmatprep.subr.bf16.mxu0 0
        %740 = vmatpush2.bf16.msra.mxu0 0
        %741 = vmatprep.subr.bf16.mxu0 0
        %742 = vmatpush2.bf16.msra.mxu0 0
        %743 = vmatprep.subr.bf16.mxu0 0
        %744 = vmatpush2.bf16.msra.mxu0 0
        %745 = vmatprep.subr.bf16.mxu0 0
        %746 = vmatpush2.bf16.msra.mxu0 0
        %747 = vmatprep.mubr.bf16.mxu0 0
        %748 = vmatmul.mubr.bf16.gmra.mxu0 %v713
        %v749 = vpop.f32.mrf.mxu0
        %v750 = vadd.f32 %v699, %v749
        %v751 = vpop.f32.mrf.mxu0
        %v752 = vpop.f32.mrf.mxu0
        %v753 = vpop.f32.mrf.mxu0
        %754 = vdwg.mxu0
        %v755 = vsub.f32 0.0, %v750
        %v756 = vmul.f32 %v755, 1.442695
        %v757 = vpow.pop %v756
        %v758 = vadd.f32 %v757, 1.0
        %v759 = vrcp.pop %v758
        %760 = vst [vmem:[#allocation7] ss:$2 sm:$0xff] %v759
        %762 = vrot.lane.b32.xlu0 %v759, 124
        %v763 = vpop.permute.xlu0 %762
        %s765 = scalar_lea.vmem [#allocation7], 1
        %766 = vst [vmem:[%s765] ss:$2 sm:$0xff] %v763
        %v767 = vld [vmem:[#allocation7] sm:$0xff]
        %v768 = vld [vmem:[#allocation7 + $0x8] sm:$0xff]
        %v769 = vsel %vm202, %v767, 0.0
        %v770 = vsel %vm202, %v768, 0.0
        %771 = vxpose.xlu0.b32.start [1/16] %v769, 128
        %772 = vxpose.xlu0.b32.cont [2/16] %v770, 128
        %773 = vxpose.xlu0.b32.cont [3/16] 0.0, 128
        %774 = vxpose.xlu0.b32.cont [4/16] 0.0, 128
        %775 = vxpose.xlu0.b32.cont [5/16] 0.0, 128
        %776 = vxpose.xlu0.b32.cont [6/16] 0.0, 128
        %777 = vxpose.xlu0.b32.cont [7/16] 0.0, 128
        %778 = vxpose.xlu0.b32.cont [8/16] 0.0, 128
        %779 = vxpose.xlu0.b32.cont [9/16] 0.0, 128
        %780 = vxpose.xlu0.b32.cont [10/16] 0.0, 128
        %781 = vxpose.xlu0.b32.cont [11/16] 0.0, 128
        %782 = vxpose.xlu0.b32.cont [12/16] 0.0, 128
        %783 = vxpose.xlu0.b32.cont [13/16] 0.0, 128
        %784 = vxpose.xlu0.b32.cont [14/16] 0.0, 128
        %785 = vxpose.xlu0.b32.cont [15/16] 0.0, 128
        %786 = vxpose.xlu0.b32.end [16/16] 0.0, 128
        %v787 = vpop.trf.xlu0
        %v788 = vpop.trf.xlu0
        %v789 = vpop.trf.xlu0
        %v790 = vpop.trf.xlu0
        %v791 = vpop.trf.xlu0
        %v792 = vpop.trf.xlu0
        %v793 = vpop.trf.xlu0
        %v794 = vpop.trf.xlu0
        %v795 = vpop.trf.xlu0
        %v796 = vpop.trf.xlu0
        %v797 = vpop.trf.xlu0
        %v798 = vpop.trf.xlu0
        %v799 = vpop.trf.xlu0
        %v800 = vpop.trf.xlu0
        %v801 = vpop.trf.xlu0
        %v802 = vpop.trf.xlu0
        %vm803 = vcmask 125952
        %804 = vst.msk [vmem:[%s161] sm:$0xf] %vm803, %v787
        %s805 = sand.u32 %s93, 1
        %s806 = scalar_lea.sflag [#allocation9], %s805
        %s807 = sand.u32 %s93, 1
        %s808 = smul.addr %s807, 4
        %s809 = scalar_lea.vmem [#allocation8], %s808
        // Predicated region
        $region33: #{conv_autoencoder_forward.1} parent=31 // pred_check
          %p810 = pneg %p103
        $region34: #{conv_autoencoder_forward.1} parent=31 // pred_check_branch
          %812 = sbr.rel (%p810) target = $region36
        $region35: #{conv_autoencoder_forward.1} parent=31 // pred_region
          %s814 = ssub.s32 64, 64
          %815 = vsyncadd %s806, %s814
          %s816 = smul.addr %s17, 64
          %s817 = scalar_lea.hbm %s3, %s816
          %s819 = sshll.u32 %s809, 4
          %s820 = int_to_ptr.vmem [resolvable:$true] %s819
          %822 = dma.vmem_to_hbm [thread:$0]  %s820, 64, %s817, %s806
        $region36: #{conv_autoencoder_forward.1} parent=31 // pred_fallthru
          _
      $region32: #{conv_autoencoder_forward.1} parent=5 // pred_fallthru
        _
      %p823 = scmp.le.s32.totalorder 2, %s12
      // Predicated region
      $region37: #{conv_autoencoder_forward.1} parent=5 // pred_check
        %p824 = pneg %p823
      $region38: #{conv_autoencoder_forward.1} parent=5 // pred_check_branch
        %826 = sbr.rel (%p824) target = $region40
      $region39: #{conv_autoencoder_forward.1} parent=5 // pred_region
        %s827 = ssub.s32 %s12, 2
        // Predicated region
        $region41: #{conv_autoencoder_forward.1} parent=39 // pred_check
          %p828 = pneg %p109
        $region42: #{conv_autoencoder_forward.1} parent=39 // pred_check_branch
          %830 = sbr.rel (%p828) target = $region44
        $region43: #{conv_autoencoder_forward.1} parent=39 // pred_region
          %s831 = sand.u32 %s94, 1
          %s832 = scalar_lea.sflag [#allocation9], %s831
          %s833 = sand.u32 %s94, 1
          %s834 = smul.addr %s833, 4
          %s835 = scalar_lea.vmem [#allocation8], %s834
          %836 = dma.done %s832, 64
        $region44: #{conv_autoencoder_forward.1} parent=39 // pred_fallthru
          _
      $region40: #{conv_autoencoder_forward.1} parent=5 // pred_fallthru
        _
    $region6: #{conv_autoencoder_forward.1} parent=1 // loop_footer
      %s16 = sadd.s32 1, %s12
    $region7: #{conv_autoencoder_forward.1} parent=1 // loop_footer_branch
      %11 = sbr.rel target = $region3
    $region8: #{conv_autoencoder_forward.1} parent=1 // loop_exit
      _
    %837 = vsyncpa [#allocation9], 1
    %s838 = scalar_lea.sflag [#allocation9], 1
    %839 = vsyncpa %s838, 1

</llo_original>
